<compile_context>
chip_gen: v7x
topology: tpu7x:2x2x1
jax: 0.10.0
libtpu: 0.0.40
codegen_flags: <defaults>
</compile_context>

<pallas_src>
import math
import jax
import jax.numpy as jnp
from jax.experimental import pallas as pl
from jax.experimental.pallas import tpu as pltpu

# Logical (PyTorch) dims and lane-padded dims.
D_IN, D_H1, D_H2, D_H3, D_OUT = 66, 198, 132, 66, 3
P_IN, P_H1, P_H2, P_H3, P_OUT = 128, 256, 256, 128, 128


def nclassifier_kernel(x_ref,
                       w1_ref, b1_ref,
                       w3_ref, b3_ref,
                       w5_ref, b5_ref,
                       wo_ref, bo_ref,
                       out_ref):
    x = x_ref[...]

    # layer_1 + SiLU
    h = jnp.dot(x, w1_ref[...], preferred_element_type=jnp.float32) + b1_ref[...]
    h = h * jax.nn.sigmoid(h)

    # BatchNorm1d(198) (eval mode) is folded into w3/b3 in the wrapper.

    # layer_3 + GELU (exact erf formulation, matching PyTorch's default nn.GELU)
    h = jnp.dot(h, w3_ref[...], preferred_element_type=jnp.float32) + b3_ref[...]
    h = 0.5 * h * (1.0 + jax.lax.erf(h * jnp.float32(1.0 / math.sqrt(2.0))))

    # layer_5 + Tanh
    h = jnp.dot(h, w5_ref[...], preferred_element_type=jnp.float32) + b5_ref[...]
    h = jnp.tanh(h)

    # Dropout(p=0.005) -> identity in eval mode.

    # layer_out + Sigmoid
    h = jnp.dot(h, wo_ref[...], preferred_element_type=jnp.float32) + bo_ref[...]
    out_ref[...] = jax.nn.sigmoid(h).astype(out_ref.dtype)


def _pad_to(a, shape):
    pads = [(0, t - s) for s, t in zip(a.shape, shape)]
    return jnp.pad(a, pads)


def prepare_params(raw_params):
    """Fold eval-mode BatchNorm into layer_3 and zero-pad everything to lane grid."""
    (w1, b1, gamma, beta, rmean, rvar, w3, b3, w5, b5, wo, bo) = raw_params

    # BN(eval): y = h * s + t, with s = gamma * rsqrt(rvar + eps), t = beta - rmean * s.
    # Since BN output feeds straight into layer_3, fold exactly:
    #   y @ w3 + b3 = h @ (diag(s) @ w3) + (t @ w3 + b3)
    s = gamma * jax.lax.rsqrt(rvar + jnp.float32(1e-5))   # [1, 198]
    t = beta - rmean * s                                   # [1, 198]
    w3f = s.reshape(-1, 1) * w3                            # [198, 132]
    b3f = b3 + t @ w3                                      # [1, 132]

    return (
        _pad_to(w1, (P_IN, P_H1)), _pad_to(b1, (1, P_H1)),
        _pad_to(w3f, (P_H1, P_H2)), _pad_to(b3f, (1, P_H2)),
        _pad_to(w5, (P_H2, P_H3)), _pad_to(b5, (1, P_H3)),
        _pad_to(wo, (P_H3, P_OUT)), _pad_to(bo, (1, P_OUT)),
    )


def nclassifier_forward(x, padded_params, *, tb=128):
    """x: [B, 66] f32. padded_params: output of prepare_params(). Returns [B, 3]."""
    B = x.shape[0]
    n_tiles = pl.cdiv(B, tb)
    Bp = n_tiles * tb
    xp = _pad_to(x.astype(jnp.float32), (Bp, P_IN))

    # Weights/biases: full-array blocks with constant index_map -> VMEM-resident
    # across all grid steps; only the x/out tiles stream per step.
    weight_specs = [pl.BlockSpec(p.shape, lambda i: (0, 0)) for p in padded_params]

    out_padded = pl.pallas_call(
        nclassifier_kernel,
        out_shape=jax.ShapeDtypeStruct((Bp, P_OUT), jnp.float32),
        grid_spec=pltpu.PrefetchScalarGridSpec(
            num_scalar_prefetch=0,
            grid=(n_tiles,),
            in_specs=[pl.BlockSpec((tb, P_IN), lambda i: (i, 0))] + weight_specs,
            out_specs=pl.BlockSpec((tb, P_OUT), lambda i: (i, 0)),
        ),
        compiler_params=pltpu.CompilerParams(
            dimension_semantics=("parallel",)),   # shard batch tiles across TCs (v7x)
    )(xp, *padded_params)

    return out_padded[:B, :D_OUT]


def init_linear(key, fan_in, fan_out):
    """PyTorch nn.Linear default init: U(-1/sqrt(fan_in), 1/sqrt(fan_in)).
    Returns weight pre-transposed to [in, out] and bias as [1, out]."""
    k = 1.0 / math.sqrt(fan_in)
    kw, kb = jax.random.split(key)
    w = jax.random.uniform(kw, (fan_in, fan_out), jnp.float32, minval=-k, maxval=k)
    b = jax.random.uniform(kb, (1, fan_out), jnp.float32, minval=-k, maxval=k)
    return w, b


def nclassifier_ref(x, raw_params):
    """Pure-JAX reference (unfolded BN, unpadded shapes) for correctness checking."""
    (w1, b1, gamma, beta, rmean, rvar, w3, b3, w5, b5, wo, bo) = raw_params
    h = x @ w1 + b1
    h = h * jax.nn.sigmoid(h)
    h = (h - rmean) * jax.lax.rsqrt(rvar + 1e-5) * gamma + beta
    h = h @ w3 + b3
    h = 0.5 * h * (1.0 + jax.lax.erf(h / jnp.sqrt(2.0)))
    h = jnp.tanh(h @ w5 + b5)
    # Dropout(p=0.005) -> identity in eval mode.
    return jax.nn.sigmoid(h @ wo + bo)


if __name__ == "__main__":
    key = jax.random.PRNGKey(0)
    kx, k1, k3, k5, ko, kg, kb_, km, kv = jax.random.split(key, 9)

    # Small demo batch; intentionally NOT a multiple of the tile to exercise padding.
    B = 200
    x = jax.random.normal(kx, (B, D_IN), jnp.float32)

    w1, b1 = init_linear(k1, D_IN, D_H1)
    w3, b3 = init_linear(k3, D_H1, D_H2)
    w5, b5 = init_linear(k5, D_H2, D_H3)
    wo, bo = init_linear(ko, D_H3, D_OUT)

    # Non-trivial BatchNorm1d(198) params / running stats so the BN fold is exercised.
    gamma = jax.random.uniform(kg, (1, D_H1), jnp.float32, minval=0.5, maxval=1.5)
    beta = 0.1 * jax.random.normal(kb_, (1, D_H1), jnp.float32)
    rmean = 0.1 * jax.random.normal(km, (1, D_H1), jnp.float32)
    rvar = jax.random.uniform(kv, (1, D_H1), jnp.float32, minval=0.5, maxval=1.5)

    raw_params = (w1, b1, gamma, beta, rmean, rvar, w3, b3, w5, b5, wo, bo)
    padded_params = prepare_params(raw_params)

    out = jax.block_until_ready(nclassifier_forward(x, padded_params, tb=128))
    ref = nclassifier_ref(x, raw_params)

    assert out.shape == (B, D_OUT), out.shape
    assert jnp.allclose(out, ref, atol=1e-4, rtol=1e-4), float(jnp.max(jnp.abs(out - ref)))

    print("KERNEL_OK")
</pallas_src>

<mosaic_0001>
module attributes {stable_mosaic.version = 11 : i64} {
  func.func @nclassifier_kernel(%arg0: i32, %arg1: memref<128x128xf32, #tpu.memory_space<vmem>>, %arg2: memref<128x256xf32, #tpu.memory_space<vmem>>, %arg3: memref<1x256xf32, #tpu.memory_space<vmem>>, %arg4: memref<256x256xf32, #tpu.memory_space<vmem>>, %arg5: memref<1x256xf32, #tpu.memory_space<vmem>>, %arg6: memref<256x128xf32, #tpu.memory_space<vmem>>, %arg7: memref<1x128xf32, #tpu.memory_space<vmem>>, %arg8: memref<128x128xf32, #tpu.memory_space<vmem>>, %arg9: memref<1x128xf32, #tpu.memory_space<vmem>>, %arg10: memref<128x128xf32, #tpu.memory_space<vmem>>) attributes {dimension_semantics = [#tpu.dimension_semantics<parallel>], iteration_bounds = array<i64: 2>, scalar_prefetch = 0 : i64, scratch_operands = 0 : i64, tpu.core_type = #tpu.core_type<tc>, window_params = [{transform_indices = @transform_0, window_bounds = array<i64: 128, 128>}, {pipeline_mode = #tpu.pipeline_mode<synchronous>, transform_indices = @transform_1, window_bounds = array<i64: 128, 256>}, {pipeline_mode = #tpu.pipeline_mode<synchronous>, transform_indices = @transform_2, window_bounds = array<i64: 1, 256>}, {pipeline_mode = #tpu.pipeline_mode<synchronous>, transform_indices = @transform_3, window_bounds = array<i64: 256, 256>}, {pipeline_mode = #tpu.pipeline_mode<synchronous>, transform_indices = @transform_4, window_bounds = array<i64: 1, 256>}, {pipeline_mode = #tpu.pipeline_mode<synchronous>, transform_indices = @transform_5, window_bounds = array<i64: 256, 128>}, {pipeline_mode = #tpu.pipeline_mode<synchronous>, transform_indices = @transform_6, window_bounds = array<i64: 1, 128>}, {pipeline_mode = #tpu.pipeline_mode<synchronous>, transform_indices = @transform_7, window_bounds = array<i64: 128, 128>}, {pipeline_mode = #tpu.pipeline_mode<synchronous>, transform_indices = @transform_8, window_bounds = array<i64: 1, 128>}, {transform_indices = @transform_9, window_bounds = array<i64: 128, 128>}]} {
    %c0 = arith.constant 0 : index
    %c0_0 = arith.constant 0 : index
    %0 = vector.load %arg1[%c0, %c0_0] : memref<128x128xf32, #tpu.memory_space<vmem>>, vector<128x128xf32>
    %c0_1 = arith.constant 0 : index
    %c0_2 = arith.constant 0 : index
    %1 = vector.load %arg2[%c0_1, %c0_2] : memref<128x256xf32, #tpu.memory_space<vmem>>, vector<128x256xf32>
    %cst = arith.constant dense<0.000000e+00> : vector<128x256xf32>
    %2 = tpu.matmul %0, %1, %cst {dimension_numbers = #tpu.dot_dimension_numbers<[1], [0], [0], [1], [0, 0, 1, 1], [], []>} : vector<128x128xf32>, vector<128x256xf32>, vector<128x256xf32> -> vector<128x256xf32>
    %c0_3 = arith.constant 0 : index
    %c0_4 = arith.constant 0 : index
    %3 = vector.load %arg3[%c0_3, %c0_4] : memref<1x256xf32, #tpu.memory_space<vmem>>, vector<1x256xf32>
    %4 = vector.broadcast %3 : vector<1x256xf32> to vector<128x256xf32>
    %5 = arith.addf %2, %4 : vector<128x256xf32>
    %6 = arith.negf %5 : vector<128x256xf32>
    %7 = math.exp %6 : vector<128x256xf32>
    %cst_5 = arith.constant 1.000000e+00 : f32
    %8 = vector.broadcast %cst_5 : f32 to vector<128x256xf32>
    %9 = arith.addf %8, %7 : vector<128x256xf32>
    %10 = arith.divf %8, %9 : vector<128x256xf32>
    %11 = arith.mulf %5, %10 : vector<128x256xf32>
    %c0_6 = arith.constant 0 : index
    %c0_7 = arith.constant 0 : index
    %12 = vector.load %arg4[%c0_6, %c0_7] : memref<256x256xf32, #tpu.memory_space<vmem>>, vector<256x256xf32>
    %cst_8 = arith.constant dense<0.000000e+00> : vector<128x256xf32>
    %13 = tpu.matmul %11, %12, %cst_8 {dimension_numbers = #tpu.dot_dimension_numbers<[1], [0], [0], [1], [0, 0, 1, 1], [], []>} : vector<128x256xf32>, vector<256x256xf32>, vector<128x256xf32> -> vector<128x256xf32>
    %c0_9 = arith.constant 0 : index
    %c0_10 = arith.constant 0 : index
    %14 = vector.load %arg5[%c0_9, %c0_10] : memref<1x256xf32, #tpu.memory_space<vmem>>, vector<1x256xf32>
    %15 = vector.broadcast %14 : vector<1x256xf32> to vector<128x256xf32>
    %16 = arith.addf %13, %15 : vector<128x256xf32>
    %cst_11 = arith.constant 5.000000e-01 : f32
    %17 = vector.broadcast %cst_11 : f32 to vector<128x256xf32>
    %18 = arith.mulf %17, %16 : vector<128x256xf32>
    %cst_12 = arith.constant 0.707106769 : f32
    %19 = vector.broadcast %cst_12 : f32 to vector<128x256xf32>
    %20 = arith.mulf %16, %19 : vector<128x256xf32>
    %21 = math.erf %20 : vector<128x256xf32>
    %cst_13 = arith.constant 1.000000e+00 : f32
    %22 = vector.broadcast %cst_13 : f32 to vector<128x256xf32>
    %23 = arith.addf %22, %21 : vector<128x256xf32>
    %24 = arith.mulf %18, %23 : vector<128x256xf32>
    %c0_14 = arith.constant 0 : index
    %c0_15 = arith.constant 0 : index
    %25 = vector.load %arg6[%c0_14, %c0_15] : memref<256x128xf32, #tpu.memory_space<vmem>>, vector<256x128xf32>
    %cst_16 = arith.constant dense<0.000000e+00> : vector<128x128xf32>
    %26 = tpu.matmul %24, %25, %cst_16 {dimension_numbers = #tpu.dot_dimension_numbers<[1], [0], [0], [1], [0, 0, 1, 1], [], []>} : vector<128x256xf32>, vector<256x128xf32>, vector<128x128xf32> -> vector<128x128xf32>
    %c0_17 = arith.constant 0 : index
    %c0_18 = arith.constant 0 : index
    %27 = vector.load %arg7[%c0_17, %c0_18] : memref<1x128xf32, #tpu.memory_space<vmem>>, vector<1x128xf32>
    %28 = vector.broadcast %27 : vector<1x128xf32> to vector<128x128xf32>
    %29 = arith.addf %26, %28 : vector<128x128xf32>
    %30 = math.tanh %29 : vector<128x128xf32>
    %c0_19 = arith.constant 0 : index
    %c0_20 = arith.constant 0 : index
    %31 = vector.load %arg8[%c0_19, %c0_20] : memref<128x128xf32, #tpu.memory_space<vmem>>, vector<128x128xf32>
    %cst_21 = arith.constant dense<0.000000e+00> : vector<128x128xf32>
    %32 = tpu.matmul %30, %31, %cst_21 {dimension_numbers = #tpu.dot_dimension_numbers<[1], [0], [0], [1], [0, 0, 1, 1], [], []>} : vector<128x128xf32>, vector<128x128xf32>, vector<128x128xf32> -> vector<128x128xf32>
    %c0_22 = arith.constant 0 : index
    %c0_23 = arith.constant 0 : index
    %33 = vector.load %arg9[%c0_22, %c0_23] : memref<1x128xf32, #tpu.memory_space<vmem>>, vector<1x128xf32>
    %34 = vector.broadcast %33 : vector<1x128xf32> to vector<128x128xf32>
    %35 = arith.addf %32, %34 : vector<128x128xf32>
    %36 = arith.negf %35 : vector<128x128xf32>
    %37 = math.exp %36 : vector<128x128xf32>
    %cst_24 = arith.constant 1.000000e+00 : f32
    %38 = vector.broadcast %cst_24 : f32 to vector<128x128xf32>
    %39 = arith.addf %38, %37 : vector<128x128xf32>
    %40 = arith.divf %38, %39 : vector<128x128xf32>
    %c0_25 = arith.constant 0 : index
    %c0_26 = arith.constant 0 : index
    %41 = vector.load %arg10[%c0_25, %c0_26] : memref<128x128xf32, #tpu.memory_space<vmem>>, vector<128x128xf32>
    tpu.vector_store %arg10[%c0_25, %c0_26], %40 {strides = array<i32>} : memref<128x128xf32, #tpu.memory_space<vmem>>, vector<128x128xf32>,
    return
  }
  func.func @transform_0(%arg0: i32) -> (i32, i32) {
    %c0_i32 = arith.constant 0 : i32
    %c0_i32_0 = arith.constant 0 : i32
    return %arg0, %c0_i32 : i32, i32
  }
  func.func @transform_1(%arg0: i32) -> (i32, i32) {
    %c0_i32 = arith.constant 0 : i32
    %c0_i32_0 = arith.constant 0 : i32
    %c0_i32_1 = arith.constant 0 : i32
    return %c0_i32, %c0_i32_0 : i32, i32
  }
  func.func @transform_2(%arg0: i32) -> (i32, i32) {
    %c0_i32 = arith.constant 0 : i32
    %c0_i32_0 = arith.constant 0 : i32
    %c0_i32_1 = arith.constant 0 : i32
    return %c0_i32, %c0_i32_0 : i32, i32
  }
  func.func @transform_3(%arg0: i32) -> (i32, i32) {
    %c0_i32 = arith.constant 0 : i32
    %c0_i32_0 = arith.constant 0 : i32
    %c0_i32_1 = arith.constant 0 : i32
    return %c0_i32, %c0_i32_0 : i32, i32
  }
  func.func @transform_4(%arg0: i32) -> (i32, i32) {
    %c0_i32 = arith.constant 0 : i32
    %c0_i32_0 = arith.constant 0 : i32
    %c0_i32_1 = arith.constant 0 : i32
    return %c0_i32, %c0_i32_0 : i32, i32
  }
  func.func @transform_5(%arg0: i32) -> (i32, i32) {
    %c0_i32 = arith.constant 0 : i32
    %c0_i32_0 = arith.constant 0 : i32
    %c0_i32_1 = arith.constant 0 : i32
    return %c0_i32, %c0_i32_0 : i32, i32
  }
  func.func @transform_6(%arg0: i32) -> (i32, i32) {
    %c0_i32 = arith.constant 0 : i32
    %c0_i32_0 = arith.constant 0 : i32
    %c0_i32_1 = arith.constant 0 : i32
    return %c0_i32, %c0_i32_0 : i32, i32
  }
  func.func @transform_7(%arg0: i32) -> (i32, i32) {
    %c0_i32 = arith.constant 0 : i32
    %c0_i32_0 = arith.constant 0 : i32
    %c0_i32_1 = arith.constant 0 : i32
    return %c0_i32, %c0_i32_0 : i32, i32
  }
  func.func @transform_8(%arg0: i32) -> (i32, i32) {
    %c0_i32 = arith.constant 0 : i32
    %c0_i32_0 = arith.constant 0 : i32
    %c0_i32_1 = arith.constant 0 : i32
    return %c0_i32, %c0_i32_0 : i32, i32
  }
  func.func @transform_9(%arg0: i32) -> (i32, i32) {
    %c0_i32 = arith.constant 0 : i32
    %c0_i32_0 = arith.constant 0 : i32
    return %arg0, %c0_i32 : i32, i32
  }
}

</mosaic_0001>

<llo_original>
// kernel: tpu_custom_call.1
$region0: #{tpu_custom_call.1}
  #allocation0 [shape = 'u32[]', space=smem, size = 0x4, offset = 0x4, fixed_abs, tag = 'smem constant byte address 0x4 - core index']
  #allocation1 [shape = 'u32[144,128]{1,0:T(1,128)}', space=vmem, size = 0x12000, scoped, tag = 'internal scratch']
  %s0 = inlined_call_operand.hbm [shape: f32[256,128], index: 0, kind: input, shape index: {}]
  %s1 = inlined_call_operand.hbm [shape: f32[128,256], index: 1, kind: input, shape index: {}]
  %s2 = inlined_call_operand.vmem [shape: f32[1,256], index: 2, kind: input, shape index: {}]
  %s3 = inlined_call_operand.hbm [shape: f32[256,256], index: 3, kind: input, shape index: {}]
  %s4 = inlined_call_operand.vmem [shape: f32[1,256], index: 4, kind: input, shape index: {}]
  %s5 = inlined_call_operand.hbm [shape: f32[256,128], index: 5, kind: input, shape index: {}]
  %s6 = inlined_call_operand.vmem [shape: f32[1,128], index: 6, kind: input, shape index: {}]
  %s7 = inlined_call_operand.hbm [shape: f32[128,128], index: 7, kind: input, shape index: {}]
  %s8 = inlined_call_operand.vmem [shape: f32[1,128], index: 8, kind: input, shape index: {}]
  %s9 = inlined_call_operand.hbm [shape: f32[256,128], index: 9, kind: output, shape index: {}]
  %s10 = sld [smem:[#allocation0]]
  $region89: #{tpu_custom_call.1} parent=0
    _
  %s12 = ssub.s32 1, %s10
  %s13 = scalar_select 0, %s12, %s10
  $region1: #{tpu_custom_call.1} parent=0
    #allocation2 [shape = 'u8[131072]{0}', space=vmem, size = 0x20000, scoped, tag = 'input window, operand 0']
    #allocation3 [shape = 's32[2]{0}', space=sflag, size = 0x8, scoped, tag = 'scoped memory for tpu_custom_call.1']
    #allocation4 [shape = 's32[2]{0}', space=sflag, size = 0x8, scoped, tag = 'scoped memory for tpu_custom_call.1']
    #allocation5 [shape = 'u8[131072]{0}', space=vmem, size = 0x20000, scoped, tag = 'input window, operand 1, single buffered']
    #allocation6 [shape = 's32[1]{0}', space=sflag, size = 0x4, scoped, tag = 'scoped memory for tpu_custom_call.1']
    #allocation7 [shape = 'u8[262144]{0}', space=vmem, size = 0x40000, scoped, tag = 'input window, operand 3, single buffered']
    #allocation8 [shape = 'u8[131072]{0}', space=vmem, size = 0x20000, scoped, tag = 'input window, operand 5, single buffered']
    #allocation9 [shape = 's32[1]{0}', space=sflag, size = 0x4, scoped, tag = 'scoped memory for tpu_custom_call.1']
    #allocation10 [shape = 'u8[65536]{0}', space=vmem, size = 0x10000, scoped, tag = 'input window, operand 7, single buffered']
    #allocation11 [shape = 'u8[131072]{0}', space=vmem, size = 0x20000, scoped, tag = 'output window, operand 0']
    %14 = vsyncpa [#allocation3], 0
    %s15 = scalar_lea.sflag [#allocation3], 1
    %16 = vsyncpa %s15, 0
    %17 = vsyncpa [#allocation6], 0
    %18 = vsyncpa [#allocation9], 0
    %19 = vsyncpa [#allocation4], 0
    %s20 = scalar_lea.sflag [#allocation4], 1
    %21 = vsyncpa %s20, 0
    loop: start=0, step=1, limit=4
    $region2: #{tpu_custom_call.1} parent=1 // loop_pre_header
      _
    $region3: #{tpu_custom_call.1} parent=1 // loop_header
      %s23 = sphi 0, %s27
      %p24 = scmp.ge.s32.totalorder %s23, 4
      %s33 = sphi 0, %s35
      %s36 = sphi 0, %s33
      %s37 = sphi 0, %s36
      %s53 = sphi 0, %s37
      %s57 = sphi 0, %s57
      %s59 = sphi 0, %s57
      %s60 = sphi 0, %s59
      %s74 = sphi 0, %s60
      %s78 = sphi 0, %s78
      %s80 = sphi 0, %s78
      %s81 = sphi 0, %s80
      %s95 = sphi 0, %s81
      %s99 = sphi 0, %s99
      %s101 = sphi 0, %s99
      %s102 = sphi 0, %s101
      %s116 = sphi 0, %s102
      %s120 = sphi 0, %s120
      %s122 = sphi 0, %s120
      %s123 = sphi 0, %s122
      %s137 = sphi 0, %s123
      %s141 = sphi 0, %s141
      %s143 = sphi 0, %s141
      %s144 = sphi 0, %s143
      %s158 = sphi 0, %s144
      %s162 = sphi 0, %s162
      %s164 = sphi 0, %s162
      %s165 = sphi 0, %s164
      %s179 = sphi 0, %s165
      %s183 = sphi 0, %s183
      %s185 = sphi 0, %s183
      %s186 = sphi 0, %s185
      %s200 = sphi 0, %s186
      %s204 = sphi 0, %s204
      %s206 = sphi 0, %s204
      %s207 = sphi 0, %s206
      %s221 = sphi 0, %s207
      %s227 = sphi 0, %s229
      %s230 = sphi 0, %s227
      %s231 = sphi 0, %s230
      %s247 = sphi 0, %s231
    $region4: #{tpu_custom_call.1} parent=1 // loop_header_branch
      %26 = sbr.rel (%p24) target = $region8
    $region5: #{tpu_custom_call.1} parent=1 // loop_body
      %s28 = ssub.s32 %s23, 1
      %s29 = ssub.s32 %s23, 2
      %s30 = sadd.s32 %s23, 1
      %s31 = ssub.s32 %s23, %s30
      %p32 = scmp.eq.s32.totalorder %s31, 0
      %s34 = sadd.s32 %s33, 1
      %s35 = scalar_select %p32, %s33, %s34
      %p38 = pneg %p32
      %p39 = scmp.eq.s32.totalorder %s23, 1
      %p40 = por %p38, %p39
      %p41 = scmp.ne.s32.totalorder %s33, %s36
      %p42 = scmp.eq.s32.totalorder %s23, 0
      %p43 = por %p41, %p42
      %p44 = scmp.ne.s32.totalorder %s33, %s36
      %p45 = scmp.eq.s32.totalorder %s28, 1
      %p46 = por %p44, %p45
      %p47 = scmp.ne.s32.totalorder %s36, %s37
      %p48 = scmp.eq.s32.totalorder %s28, 0
      %p49 = por %p47, %p48
      %p50 = scmp.ne.s32.totalorder %s36, %s37
      %p51 = scmp.eq.s32.totalorder %s29, 1
      %p52 = por %p50, %p51
      %p54 = scmp.ne.s32.totalorder %s37, %s53
      %p55 = scmp.eq.s32.totalorder %s29, 0
      %p56 = por %p54, %p55
      %s58 = sadd.s32 %s57, 1
      %p61 = scmp.eq.s32.totalorder %s23, 1
      %p62 = scmp.ne.s32.totalorder %s57, %s59
      %p63 = scmp.eq.s32.totalorder %s23, 0
      %p64 = por %p62, %p63
      %p65 = scmp.ne.s32.totalorder %s57, %s59
      %p66 = scmp.eq.s32.totalorder %s28, 1
      %p67 = por %p65, %p66
      %p68 = scmp.ne.s32.totalorder %s59, %s60
      %p69 = scmp.eq.s32.totalorder %s28, 0
      %p70 = por %p68, %p69
      %p71 = scmp.ne.s32.totalorder %s59, %s60
      %p72 = scmp.eq.s32.totalorder %s29, 1
      %p73 = por %p71, %p72
      %p75 = scmp.ne.s32.totalorder %s60, %s74
      %p76 = scmp.eq.s32.totalorder %s29, 0
      %p77 = por %p75, %p76
      %s79 = sadd.s32 %s78, 1
      %p82 = scmp.eq.s32.totalorder %s23, 1
      %p83 = scmp.ne.s32.totalorder %s78, %s80
      %p84 = scmp.eq.s32.totalorder %s23, 0
      %p85 = por %p83, %p84
      %p86 = scmp.ne.s32.totalorder %s78, %s80
      %p87 = scmp.eq.s32.totalorder %s28, 1
      %p88 = por %p86, %p87
      %p89 = scmp.ne.s32.totalorder %s80, %s81
      %p90 = scmp.eq.s32.totalorder %s28, 0
      %p91 = por %p89, %p90
      %p92 = scmp.ne.s32.totalorder %s80, %s81
      %p93 = scmp.eq.s32.totalorder %s29, 1
      %p94 = por %p92, %p93
      %p96 = scmp.ne.s32.totalorder %s81, %s95
      %p97 = scmp.eq.s32.totalorder %s29, 0
      %p98 = por %p96, %p97
      %s100 = sadd.s32 %s99, 1
      %p103 = scmp.eq.s32.totalorder %s23, 1
      %p104 = scmp.ne.s32.totalorder %s99, %s101
      %p105 = scmp.eq.s32.totalorder %s23, 0
      %p106 = por %p104, %p105
      %p107 = scmp.ne.s32.totalorder %s99, %s101
      %p108 = scmp.eq.s32.totalorder %s28, 1
      %p109 = por %p107, %p108
      %p110 = scmp.ne.s32.totalorder %s101, %s102
      %p111 = scmp.eq.s32.totalorder %s28, 0
      %p112 = por %p110, %p111
      %p113 = scmp.ne.s32.totalorder %s101, %s102
      %p114 = scmp.eq.s32.totalorder %s29, 1
      %p115 = por %p113, %p114
      %p117 = scmp.ne.s32.totalorder %s102, %s116
      %p118 = scmp.eq.s32.totalorder %s29, 0
      %p119 = por %p117, %p118
      %s121 = sadd.s32 %s120, 1
      %p124 = scmp.eq.s32.totalorder %s23, 1
      %p125 = scmp.ne.s32.totalorder %s120, %s122
      %p126 = scmp.eq.s32.totalorder %s23, 0
      %p127 = por %p125, %p126
      %p128 = scmp.ne.s32.totalorder %s120, %s122
      %p129 = scmp.eq.s32.totalorder %s28, 1
      %p130 = por %p128, %p129
      %p131 = scmp.ne.s32.totalorder %s122, %s123
      %p132 = scmp.eq.s32.totalorder %s28, 0
      %p133 = por %p131, %p132
      %p134 = scmp.ne.s32.totalorder %s122, %s123
      %p135 = scmp.eq.s32.totalorder %s29, 1
      %p136 = por %p134, %p135
      %p138 = scmp.ne.s32.totalorder %s123, %s137
      %p139 = scmp.eq.s32.totalorder %s29, 0
      %p140 = por %p138, %p139
      %s142 = sadd.s32 %s141, 1
      %p145 = scmp.eq.s32.totalorder %s23, 1
      %p146 = scmp.ne.s32.totalorder %s141, %s143
      %p147 = scmp.eq.s32.totalorder %s23, 0
      %p148 = por %p146, %p147
      %p149 = scmp.ne.s32.totalorder %s141, %s143
      %p150 = scmp.eq.s32.totalorder %s28, 1
      %p151 = por %p149, %p150
      %p152 = scmp.ne.s32.totalorder %s143, %s144
      %p153 = scmp.eq.s32.totalorder %s28, 0
      %p154 = por %p152, %p153
      %p155 = scmp.ne.s32.totalorder %s143, %s144
      %p156 = scmp.eq.s32.totalorder %s29, 1
      %p157 = por %p155, %p156
      %p159 = scmp.ne.s32.totalorder %s144, %s158
      %p160 = scmp.eq.s32.totalorder %s29, 0
      %p161 = por %p159, %p160
      %s163 = sadd.s32 %s162, 1
      %p166 = scmp.eq.s32.totalorder %s23, 1
      %p167 = scmp.ne.s32.totalorder %s162, %s164
      %p168 = scmp.eq.s32.totalorder %s23, 0
      %p169 = por %p167, %p168
      %p170 = scmp.ne.s32.totalorder %s162, %s164
      %p171 = scmp.eq.s32.totalorder %s28, 1
      %p172 = por %p170, %p171
      %p173 = scmp.ne.s32.totalorder %s164, %s165
      %p174 = scmp.eq.s32.totalorder %s28, 0
      %p175 = por %p173, %p174
      %p176 = scmp.ne.s32.totalorder %s164, %s165
      %p177 = scmp.eq.s32.totalorder %s29, 1
      %p178 = por %p176, %p177
      %p180 = scmp.ne.s32.totalorder %s165, %s179
      %p181 = scmp.eq.s32.totalorder %s29, 0
      %p182 = por %p180, %p181
      %s184 = sadd.s32 %s183, 1
      %p187 = scmp.eq.s32.totalorder %s23, 1
      %p188 = scmp.ne.s32.totalorder %s183, %s185
      %p189 = scmp.eq.s32.totalorder %s23, 0
      %p190 = por %p188, %p189
      %p191 = scmp.ne.s32.totalorder %s183, %s185
      %p192 = scmp.eq.s32.totalorder %s28, 1
      %p193 = por %p191, %p192
      %p194 = scmp.ne.s32.totalorder %s185, %s186
      %p195 = scmp.eq.s32.totalorder %s28, 0
      %p196 = por %p194, %p195
      %p197 = scmp.ne.s32.totalorder %s185, %s186
      %p198 = scmp.eq.s32.totalorder %s29, 1
      %p199 = por %p197, %p198
      %p201 = scmp.ne.s32.totalorder %s186, %s200
      %p202 = scmp.eq.s32.totalorder %s29, 0
      %p203 = por %p201, %p202
      %s205 = sadd.s32 %s204, 1
      %p208 = scmp.eq.s32.totalorder %s23, 1
      %p209 = scmp.ne.s32.totalorder %s204, %s206
      %p210 = scmp.eq.s32.totalorder %s23, 0
      %p211 = por %p209, %p210
      %p212 = scmp.ne.s32.totalorder %s204, %s206
      %p213 = scmp.eq.s32.totalorder %s28, 1
      %p214 = por %p212, %p213
      %p215 = scmp.ne.s32.totalorder %s206, %s207
      %p216 = scmp.eq.s32.totalorder %s28, 0
      %p217 = por %p215, %p216
      %p218 = scmp.ne.s32.totalorder %s206, %s207
      %p219 = scmp.eq.s32.totalorder %s29, 1
      %p220 = por %p218, %p219
      %p222 = scmp.ne.s32.totalorder %s207, %s221
      %p223 = scmp.eq.s32.totalorder %s29, 0
      %p224 = por %p222, %p223
      %s225 = ssub.s32 %s23, %s30
      %p226 = scmp.eq.s32.totalorder %s225, 0
      %s228 = sadd.s32 %s227, 1
      %s229 = scalar_select %p226, %s227, %s228
      %p232 = pneg %p226
      %p233 = scmp.eq.s32.totalorder %s23, 1
      %p234 = por %p232, %p233
      %p235 = scmp.ne.s32.totalorder %s227, %s230
      %p236 = scmp.eq.s32.totalorder %s23, 0
      %p237 = por %p235, %p236
      %p238 = scmp.ne.s32.totalorder %s227, %s230
      %p239 = scmp.eq.s32.totalorder %s28, 1
      %p240 = por %p238, %p239
      %p241 = scmp.ne.s32.totalorder %s230, %s231
      %p242 = scmp.eq.s32.totalorder %s28, 0
      %p243 = por %p241, %p242
      %p244 = scmp.ne.s32.totalorder %s230, %s231
      %p245 = scmp.eq.s32.totalorder %s29, 1
      %p246 = por %p244, %p245
      %p248 = scmp.ne.s32.totalorder %s231, %s247
      %p249 = scmp.eq.s32.totalorder %s29, 0
      %p250 = por %p248, %p249
      %p251 = scmp.le.s32.totalorder 1, %s23
      %p252 = scmp.lt.s32.totalorder %s23, 3
      %p253 = pnand %p251, %p252
      %p254 = pneg %p253
      // Predicated region
      $region9: #{tpu_custom_call.1} parent=5 // pred_check
        _
      $region10: #{tpu_custom_call.1} parent=5 // pred_check_branch
        %256 = sbr.rel (%p253) target = $region12
      $region11: #{tpu_custom_call.1} parent=5 // pred_region
        %s257 = ssub.s32 %s23, 1
        // Predicated region
        $region13: #{tpu_custom_call.1} parent=11 // pred_check
          %p258 = pneg %p70
        $region14: #{tpu_custom_call.1} parent=11 // pred_check_branch
          %260 = sbr.rel (%p258) target = $region16
        $region15: #{tpu_custom_call.1} parent=11 // pred_region
          %s262 = ssub.s32 4096, 4096
          %263 = vsyncadd [#allocation6], %s262
          %s264 = sshll.u32 [#allocation5], 4
          %s265 = int_to_ptr.vmem [resolvable:$true] %s264
          %270 = dma.hbm_to_vmem [thread:$0]  %s1, 4096, %s265, [#allocation6], 256, 256, 16
        $region16: #{tpu_custom_call.1} parent=11 // pred_fallthru
          _
        // Predicated region
        $region17: #{tpu_custom_call.1} parent=11 // pred_check
          %p271 = pneg %p91
        $region18: #{tpu_custom_call.1} parent=11 // pred_check_branch
          %273 = sbr.rel (%p271) target = $region20
        $region19: #{tpu_custom_call.1} parent=11 // pred_region
          _
        $region20: #{tpu_custom_call.1} parent=11 // pred_fallthru
          _
        // Predicated region
        $region21: #{tpu_custom_call.1} parent=11 // pred_check
          %p274 = pneg %p112
        $region22: #{tpu_custom_call.1} parent=11 // pred_check_branch
          %276 = sbr.rel (%p274) target = $region24
        $region23: #{tpu_custom_call.1} parent=11 // pred_region
          %s278 = ssub.s32 8192, 8192
          %279 = vsyncadd [#allocation6], %s278
          %s280 = sshll.u32 [#allocation7], 4
          %s281 = int_to_ptr.vmem [resolvable:$true] %s280
          %286 = dma.hbm_to_vmem [thread:$0]  %s3, 8192, %s281, [#allocation6], 256, 256, 16
        $region24: #{tpu_custom_call.1} parent=11 // pred_fallthru
          _
        // Predicated region
        $region25: #{tpu_custom_call.1} parent=11 // pred_check
          %p287 = pneg %p133
        $region26: #{tpu_custom_call.1} parent=11 // pred_check_branch
          %289 = sbr.rel (%p287) target = $region28
        $region27: #{tpu_custom_call.1} parent=11 // pred_region
          _
        $region28: #{tpu_custom_call.1} parent=11 // pred_fallthru
          _
        // Predicated region
        $region29: #{tpu_custom_call.1} parent=11 // pred_check
          %p290 = pneg %p154
        $region30: #{tpu_custom_call.1} parent=11 // pred_check_branch
          %292 = sbr.rel (%p290) target = $region32
        $region31: #{tpu_custom_call.1} parent=11 // pred_region
          %s294 = ssub.s32 4096, 4096
          %295 = vsyncadd [#allocation9], %s294
          %s296 = sshll.u32 [#allocation8], 4
          %s297 = int_to_ptr.vmem [resolvable:$true] %s296
          %302 = dma.hbm_to_vmem [thread:$0]  %s5, 4096, %s297, [#allocation9], 128, 128, 8
        $region32: #{tpu_custom_call.1} parent=11 // pred_fallthru
          _
        // Predicated region
        $region33: #{tpu_custom_call.1} parent=11 // pred_check
          %p303 = pneg %p175
        $region34: #{tpu_custom_call.1} parent=11 // pred_check_branch
          %305 = sbr.rel (%p303) target = $region36
        $region35: #{tpu_custom_call.1} parent=11 // pred_region
          _
        $region36: #{tpu_custom_call.1} parent=11 // pred_fallthru
          _
        // Predicated region
        $region37: #{tpu_custom_call.1} parent=11 // pred_check
          %p306 = pneg %p196
        $region38: #{tpu_custom_call.1} parent=11 // pred_check_branch
          %308 = sbr.rel (%p306) target = $region40
        $region39: #{tpu_custom_call.1} parent=11 // pred_region
          %s310 = ssub.s32 2048, 2048
          %311 = vsyncadd [#allocation9], %s310
          %s312 = sshll.u32 [#allocation10], 4
          %s313 = int_to_ptr.vmem [resolvable:$true] %s312
          %318 = dma.hbm_to_vmem [thread:$0]  %s7, 2048, %s313, [#allocation9], 128, 128, 8
        $region40: #{tpu_custom_call.1} parent=11 // pred_fallthru
          _
        // Predicated region
        $region41: #{tpu_custom_call.1} parent=11 // pred_check
          %p319 = pneg %p217
        $region42: #{tpu_custom_call.1} parent=11 // pred_check_branch
          %321 = sbr.rel (%p319) target = $region44
        $region43: #{tpu_custom_call.1} parent=11 // pred_region
          _
        $region44: #{tpu_custom_call.1} parent=11 // pred_fallthru
          _
      $region12: #{tpu_custom_call.1} parent=5 // pred_fallthru
        _
      %p322 = scmp.lt.s32.totalorder %s23, 2
      // Predicated region
      $region45: #{tpu_custom_call.1} parent=5 // pred_check
        %p323 = pneg %p322
      $region46: #{tpu_custom_call.1} parent=5 // pred_check_branch
        %325 = sbr.rel (%p323) target = $region48
      $region47: #{tpu_custom_call.1} parent=5 // pred_region
        // Predicated region
        $region49: #{tpu_custom_call.1} parent=47 // pred_check
          %p326 = pneg %p43
        $region50: #{tpu_custom_call.1} parent=47 // pred_check_branch
          %328 = sbr.rel (%p326) target = $region52
        $region51: #{tpu_custom_call.1} parent=47 // pred_region
          %s329 = sand.u32 %s33, 1
          %s330 = scalar_lea.sflag [#allocation3], %s329
          %s331 = sand.u32 %s33, 1
          %s332 = smul.addr %s331, 128
          %s333 = scalar_lea.vmem [#allocation2], %s332
          %s334 = smul.u32 16, %s23
          %s336 = ssub.s32 2048, 2048
          %337 = vsyncadd %s330, %s336
          %s338 = smul.addr %s334, 128
          %s339 = scalar_lea.hbm %s0, %s338
          %s340 = sshll.u32 %s333, 4
          %s341 = int_to_ptr.vmem [resolvable:$true] %s340
          %346 = dma.hbm_to_vmem [thread:$0]  %s339, 2048, %s341, %s330, 128, 128, 8
        $region52: #{tpu_custom_call.1} parent=47 // pred_fallthru
          _
      $region48: #{tpu_custom_call.1} parent=5 // pred_fallthru
        _
      %p347 = scmp.le.s32.totalorder 1, %s23
      %p348 = scmp.lt.s32.totalorder %s23, 3
      %p349 = pnand %p347, %p348
      %p350 = pneg %p349
      // Predicated region
      $region53: #{tpu_custom_call.1} parent=5 // pred_check
        _
      $region54: #{tpu_custom_call.1} parent=5 // pred_check_branch
        %352 = sbr.rel (%p349) target = $region56
      $region55: #{tpu_custom_call.1} parent=5 // pred_region
        %s353 = ssub.s32 %s23, 1
        %s354 = sand.u32 %s36, 1
        %s355 = scalar_lea.sflag [#allocation3], %s354
        %s356 = sand.u32 %s36, 1
        %s357 = smul.addr %s356, 128
        %s358 = scalar_lea.vmem [#allocation2], %s357
        // Predicated region
        $region57: #{tpu_custom_call.1} parent=55 // pred_check
          %p359 = pneg %p49
        $region58: #{tpu_custom_call.1} parent=55 // pred_check_branch
          %361 = sbr.rel (%p359) target = $region60
        $region59: #{tpu_custom_call.1} parent=55 // pred_region
          %362 = dma.done %s355, 2048
        $region60: #{tpu_custom_call.1} parent=55 // pred_fallthru
          _
        // Predicated region
        $region61: #{tpu_custom_call.1} parent=55 // pred_check
          %p363 = pneg %p70
        $region62: #{tpu_custom_call.1} parent=55 // pred_check_branch
          %365 = sbr.rel (%p363) target = $region64
        $region63: #{tpu_custom_call.1} parent=55 // pred_region
          %366 = dma.done [#allocation6], 4096
        $region64: #{tpu_custom_call.1} parent=55 // pred_fallthru
          _
        // Predicated region
        $region65: #{tpu_custom_call.1} parent=55 // pred_check
          %p367 = pneg %p112
        $region66: #{tpu_custom_call.1} parent=55 // pred_check_branch
          %369 = sbr.rel (%p367) target = $region68
        $region67: #{tpu_custom_call.1} parent=55 // pred_region
          %370 = dma.done [#allocation6], 8192
        $region68: #{tpu_custom_call.1} parent=55 // pred_fallthru
          _
        // Predicated region
        $region69: #{tpu_custom_call.1} parent=55 // pred_check
          %p371 = pneg %p154
        $region70: #{tpu_custom_call.1} parent=55 // pred_check_branch
          %373 = sbr.rel (%p371) target = $region72
        $region71: #{tpu_custom_call.1} parent=55 // pred_region
          %374 = dma.done [#allocation9], 4096
        $region72: #{tpu_custom_call.1} parent=55 // pred_fallthru
          _
        // Predicated region
        $region73: #{tpu_custom_call.1} parent=55 // pred_check
          %p375 = pneg %p196
        $region74: #{tpu_custom_call.1} parent=55 // pred_check_branch
          %377 = sbr.rel (%p375) target = $region76
        $region75: #{tpu_custom_call.1} parent=55 // pred_region
          %378 = dma.done [#allocation9], 2048
        $region76: #{tpu_custom_call.1} parent=55 // pred_fallthru
          _
        %s379 = sand.u32 %s36, 1
        %s380 = scalar_lea.sflag [#allocation3], %s379
        %s381 = sand.u32 %s36, 1
        %s382 = smul.addr %s381, 128
        %s383 = scalar_lea.vmem [#allocation2], %s382
        %p384 = pneg %p49
        %p385 = pneg %p46
        %p386 = pneg %p70
        %p387 = pneg %p67
        %p388 = pneg %p91
        %p389 = pneg %p88
        %p390 = pneg %p112
        %p391 = pneg %p109
        %p392 = pneg %p133
        %p393 = pneg %p130
        %p394 = pneg %p154
        %p395 = pneg %p151
        %p396 = pneg %p175
        %p397 = pneg %p172
        %p398 = pneg %p196
        %p399 = pneg %p193
        %p400 = pneg %p217
        %p401 = pneg %p214
        %p402 = pneg %p243
        %p403 = pneg %p240
        %s404 = sand.u32 %s230, 1
        %s405 = scalar_lea.sflag [#allocation4], %s404
        %s406 = sand.u32 %s230, 1
        %s407 = smul.addr %s406, 128
        %s408 = scalar_lea.vmem [#allocation11], %s407
        %s409 = smul.u32 16, %s28
        %s410 = smul.u32 16, %s28
        %v411 = vld [vmem:[%s358] sm:$0xff]
        %v412 = vld [vmem:[%s358 + $0x8] sm:$0xff]
        %v413 = vld [vmem:[%s358 + $0x10] sm:$0xff]
        %v414 = vld [vmem:[%s358 + $0x18] sm:$0xff]
        %v415 = vld [vmem:[%s358 + $0x20] sm:$0xff]
        %v416 = vld [vmem:[%s358 + $0x28] sm:$0xff]
        %v417 = vld [vmem:[%s358 + $0x30] sm:$0xff]
        %v418 = vld [vmem:[%s358 + $0x38] sm:$0xff]
        %v419 = vld [vmem:[%s358 + $0x40] sm:$0xff]
        %v420 = vld [vmem:[%s358 + $0x48] sm:$0xff]
        %v421 = vld [vmem:[%s358 + $0x50] sm:$0xff]
        %v422 = vld [vmem:[%s358 + $0x58] sm:$0xff]
        %v423 = vld [vmem:[%s358 + $0x60] sm:$0xff]
        %v424 = vld [vmem:[%s358 + $0x68] sm:$0xff]
        %v425 = vld [vmem:[%s358 + $0x70] sm:$0xff]
        %v426 = vld [vmem:[%s358 + $0x78] sm:$0xff]
        %v427 = vld [vmem:[#allocation5] sm:$0xff]
        %v428 = vld [vmem:[#allocation5 + $0x8] sm:$0xff]
        %v429 = vld [vmem:[#allocation5 + $0x10] sm:$0xff]
        %v430 = vld [vmem:[#allocation5 + $0x18] sm:$0xff]
        %v431 = vld [vmem:[#allocation5 + $0x20] sm:$0xff]
        %v432 = vld [vmem:[#allocation5 + $0x28] sm:$0xff]
        %v433 = vld [vmem:[#allocation5 + $0x30] sm:$0xff]
        %v434 = vld [vmem:[#allocation5 + $0x38] sm:$0xff]
        %v435 = vld [vmem:[#allocation5 + $0x40] sm:$0xff]
        %v436 = vld [vmem:[#allocation5 + $0x48] sm:$0xff]
        %v437 = vld [vmem:[#allocation5 + $0x50] sm:$0xff]
        %v438 = vld [vmem:[#allocation5 + $0x58] sm:$0xff]
        %v439 = vld [vmem:[#allocation5 + $0x60] sm:$0xff]
        %v440 = vld [vmem:[#allocation5 + $0x68] sm:$0xff]
        %v441 = vld [vmem:[#allocation5 + $0x70] sm:$0xff]
        %v442 = vld [vmem:[#allocation5 + $0x78] sm:$0xff]
        %v443 = vld [vmem:[#allocation5 + $0x80] sm:$0xff]
        %v444 = vld [vmem:[#allocation5 + $0x88] sm:$0xff]
        %v445 = vld [vmem:[#allocation5 + $0x90] sm:$0xff]
        %v446 = vld [vmem:[#allocation5 + $0x98] sm:$0xff]
        %v447 = vld [vmem:[#allocation5 + $0xa0] sm:$0xff]
        %v448 = vld [vmem:[#allocation5 + $0xa8] sm:$0xff]
        %v449 = vld [vmem:[#allocation5 + $0xb0] sm:$0xff]
        %v450 = vld [vmem:[#allocation5 + $0xb8] sm:$0xff]
        %v451 = vld [vmem:[#allocation5 + $0xc0] sm:$0xff]
        %v452 = vld [vmem:[#allocation5 + $0xc8] sm:$0xff]
        %v453 = vld [vmem:[#allocation5 + $0xd0] sm:$0xff]
        %v454 = vld [vmem:[#allocation5 + $0xd8] sm:$0xff]
        %v455 = vld [vmem:[#allocation5 + $0xe0] sm:$0xff]
        %v456 = vld [vmem:[#allocation5 + $0xe8] sm:$0xff]
        %v457 = vld [vmem:[#allocation5 + $0xf0] sm:$0xff]
        %v458 = vld [vmem:[#allocation5 + $0xf8] sm:$0xff]
        %v459 = vld [vmem:[%s2] sm:$0x3]
        %v461 = vlaneseq
        %v462 = vshrl.u32 %v461, 7
        %v463 = vsub.s32 0, %v462
        %v464 = vrot.slane %v459, %v463
        %v465 = vlaneseq
        %v466 = vshrl.u32 %v465, 7
        %v467 = vsub.s32 1, %v466
        %v468 = vrot.slane %v459, %v467
        %471 = vmatprep.subr.mxu0 %v428
        %472 = vmatpush1.msra.mxu0 %v427
        %473 = vmatprep.subr.mxu0 %v430
        %474 = vmatpush1.msra.mxu0 %v429
        %475 = vmatprep.subr.mxu0 %v432
        %476 = vmatpush1.msra.mxu0 %v431
        %477 = vmatprep.subr.mxu0 %v434
        %478 = vmatpush1.msra.mxu0 %v433
        %479 = vmatprep.subr.mxu0 %v436
        %480 = vmatpush1.msra.mxu0 %v435
        %481 = vmatprep.subr.mxu0 %v438
        %482 = vmatpush1.msra.mxu0 %v437
        %483 = vmatprep.subr.mxu0 %v440
        %484 = vmatpush1.msra.mxu0 %v439
        %485 = vmatprep.subr.mxu0 %v442
        %486 = vmatpush1.msra.mxu0 %v441
        %487 = vmatprep.subr.mxu0 %v444
        %488 = vmatpush1.msra.mxu0 %v443
        %489 = vmatprep.subr.mxu0 %v446
        %490 = vmatpush1.msra.mxu0 %v445
        %491 = vmatprep.subr.mxu0 %v448
        %492 = vmatpush1.msra.mxu0 %v447
        %493 = vmatprep.subr.mxu0 %v450
        %494 = vmatpush1.msra.mxu0 %v449
        %495 = vmatprep.subr.mxu0 %v452
        %496 = vmatpush1.msra.mxu0 %v451
        %497 = vmatprep.subr.mxu0 %v454
        %498 = vmatpush1.msra.mxu0 %v453
        %499 = vmatprep.subr.mxu0 %v456
        %500 = vmatpush1.msra.mxu0 %v455
        %501 = vmatprep.subr.mxu0 %v458
        %502 = vmatpush1.msra.mxu0 %v457
        %503 = vmatprep.subr.mxu0 0.0
        %504 = vmatpush1.msra.mxu0 0.0
        %505 = vmatprep.subr.mxu0 0.0
        %506 = vmatpush1.msra.mxu0 0.0
        %507 = vmatprep.subr.mxu0 0.0
        %508 = vmatpush1.msra.mxu0 0.0
        %509 = vmatprep.subr.mxu0 0.0
        %510 = vmatpush1.msra.mxu0 0.0
        %511 = vmatprep.subr.mxu0 0.0
        %512 = vmatpush1.msra.mxu0 0.0
        %513 = vmatprep.subr.mxu0 0.0
        %514 = vmatpush1.msra.mxu0 0.0
        %515 = vmatprep.subr.mxu0 0.0
        %516 = vmatpush1.msra.mxu0 0.0
        %517 = vmatprep.subr.mxu0 0.0
        %518 = vmatpush1.msra.mxu0 0.0
        %519 = vmatprep.subr.mxu0 0.0
        %520 = vmatpush1.msra.mxu0 0.0
        %521 = vmatprep.subr.mxu0 0.0
        %522 = vmatpush1.msra.mxu0 0.0
        %523 = vmatprep.subr.mxu0 0.0
        %524 = vmatpush1.msra.mxu0 0.0
        %525 = vmatprep.subr.mxu0 0.0
        %526 = vmatpush1.msra.mxu0 0.0
        %527 = vmatprep.subr.mxu0 0.0
        %528 = vmatpush1.msra.mxu0 0.0
        %529 = vmatprep.subr.mxu0 0.0
        %530 = vmatpush1.msra.mxu0 0.0
        %531 = vmatprep.subr.mxu0 0.0
        %532 = vmatpush1.msra.mxu0 0.0
        %533 = vmatprep.subr.mxu0 0.0
        %534 = vmatpush1.msra.mxu0 0.0
        %535 = vmatprep.mubr.f32.mxu0 0.0
        %536 = vmatmul.mubr.f32.gmra.mrb[0].mxu0 %v411
        %v537 = vpop.f32.mrb[0].mxu0
        %v538 = vadd.f32 %v464, %v537
        %v539 = vpop.f32.mrb[0].mxu0
        %v540 = vadd.f32 %v468, %v539
        %541 = vmatprep.mubr.f32.mxu0 0.0
        %542 = vmatmul.mubr.f32.gmra.mrb[0].mxu0 %v412
        %v543 = vpop.f32.mrb[0].mxu0
        %v544 = vadd.f32 %v464, %v543
        %v545 = vpop.f32.mrb[0].mxu0
        %v546 = vadd.f32 %v468, %v545
        %547 = vmatprep.mubr.f32.mxu0 0.0
        %548 = vmatmul.mubr.f32.gmra.mrb[0].mxu0 %v413
        %v549 = vpop.f32.mrb[0].mxu0
        %v550 = vadd.f32 %v464, %v549
        %v551 = vpop.f32.mrb[0].mxu0
        %v552 = vadd.f32 %v468, %v551
        %553 = vmatprep.mubr.f32.mxu0 0.0
        %554 = vmatmul.mubr.f32.gmra.mrb[0].mxu0 %v414
        %v555 = vpop.f32.mrb[0].mxu0
        %v556 = vadd.f32 %v464, %v555
        %v557 = vpop.f32.mrb[0].mxu0
        %v558 = vadd.f32 %v468, %v557
        %559 = vmatprep.mubr.f32.mxu0 0.0
        %560 = vmatmul.mubr.f32.gmra.mrb[0].mxu0 %v415
        %v561 = vpop.f32.mrb[0].mxu0
        %v562 = vadd.f32 %v464, %v561
        %v563 = vpop.f32.mrb[0].mxu0
        %v564 = vadd.f32 %v468, %v563
        %565 = vmatprep.mubr.f32.mxu0 0.0
        %566 = vmatmul.mubr.f32.gmra.mrb[0].mxu0 %v416
        %v567 = vpop.f32.mrb[0].mxu0
        %v568 = vadd.f32 %v464, %v567
        %v569 = vpop.f32.mrb[0].mxu0
        %v570 = vadd.f32 %v468, %v569
        %571 = vmatprep.mubr.f32.mxu0 0.0
        %572 = vmatmul.mubr.f32.gmra.mrb[0].mxu0 %v417
        %v573 = vpop.f32.mrb[0].mxu0
        %v574 = vadd.f32 %v464, %v573
        %v575 = vpop.f32.mrb[0].mxu0
        %v576 = vadd.f32 %v468, %v575
        %577 = vmatprep.mubr.f32.mxu0 0.0
        %578 = vmatmul.mubr.f32.gmra.mrb[0].mxu0 %v418
        %v579 = vpop.f32.mrb[0].mxu0
        %v580 = vadd.f32 %v464, %v579
        %v581 = vpop.f32.mrb[0].mxu0
        %v582 = vadd.f32 %v468, %v581
        %583 = vmatprep.mubr.f32.mxu0 0.0
        %584 = vmatmul.mubr.f32.gmra.mrb[0].mxu0 %v419
        %v585 = vpop.f32.mrb[0].mxu0
        %v586 = vadd.f32 %v464, %v585
        %v587 = vpop.f32.mrb[0].mxu0
        %v588 = vadd.f32 %v468, %v587
        %589 = vmatprep.mubr.f32.mxu0 0.0
        %590 = vmatmul.mubr.f32.gmra.mrb[0].mxu0 %v420
        %v591 = vpop.f32.mrb[0].mxu0
        %v592 = vadd.f32 %v464, %v591
        %v593 = vpop.f32.mrb[0].mxu0
        %v594 = vadd.f32 %v468, %v593
        %595 = vmatprep.mubr.f32.mxu0 0.0
        %596 = vmatmul.mubr.f32.gmra.mrb[0].mxu0 %v421
        %v597 = vpop.f32.mrb[0].mxu0
        %v598 = vadd.f32 %v464, %v597
        %v599 = vpop.f32.mrb[0].mxu0
        %v600 = vadd.f32 %v468, %v599
        %601 = vmatprep.mubr.f32.mxu0 0.0
        %602 = vmatmul.mubr.f32.gmra.mrb[0].mxu0 %v422
        %v603 = vpop.f32.mrb[0].mxu0
        %v604 = vadd.f32 %v464, %v603
        %v605 = vpop.f32.mrb[0].mxu0
        %v606 = vadd.f32 %v468, %v605
        %607 = vmatprep.mubr.f32.mxu0 0.0
        %608 = vmatmul.mubr.f32.gmra.mrb[0].mxu0 %v423
        %v609 = vpop.f32.mrb[0].mxu0
        %v610 = vadd.f32 %v464, %v609
        %v611 = vpop.f32.mrb[0].mxu0
        %v612 = vadd.f32 %v468, %v611
        %613 = vmatprep.mubr.f32.mxu0 0.0
        %614 = vmatmul.mubr.f32.gmra.mrb[0].mxu0 %v424
        %v615 = vpop.f32.mrb[0].mxu0
        %v616 = vadd.f32 %v464, %v615
        %v617 = vpop.f32.mrb[0].mxu0
        %v618 = vadd.f32 %v468, %v617
        %619 = vmatprep.mubr.f32.mxu0 0.0
        %620 = vmatmul.mubr.f32.gmra.mrb[0].mxu0 %v425
        %v621 = vpop.f32.mrb[0].mxu0
        %v622 = vadd.f32 %v464, %v621
        %v623 = vpop.f32.mrb[0].mxu0
        %v624 = vadd.f32 %v468, %v623
        %625 = vmatprep.mubr.f32.mxu0 0.0
        %626 = vmatmul.mubr.f32.gmra.mrb[0].mxu0 %v426
        %v627 = vpop.f32.mrb[0].mxu0
        %v628 = vadd.f32 %v464, %v627
        %v629 = vpop.f32.mrb[0].mxu0
        %v630 = vadd.f32 %v468, %v629
        %631 = vdwg.mxu0
        %v632 = vxor.u32 %v538, 2147483648
        %v633 = vxor.u32 %v540, 2147483648
        %v634 = vxor.u32 %v544, 2147483648
        %v635 = vxor.u32 %v546, 2147483648
        %v636 = vxor.u32 %v550, 2147483648
        %v637 = vxor.u32 %v552, 2147483648
        %v638 = vxor.u32 %v556, 2147483648
        %v639 = vxor.u32 %v558, 2147483648
        %v640 = vxor.u32 %v562, 2147483648
        %v641 = vxor.u32 %v564, 2147483648
        %v642 = vxor.u32 %v568, 2147483648
        %v643 = vxor.u32 %v570, 2147483648
        %v644 = vxor.u32 %v574, 2147483648
        %v645 = vxor.u32 %v576, 2147483648
        %v646 = vxor.u32 %v580, 2147483648
        %v647 = vxor.u32 %v582, 2147483648
        %v648 = vxor.u32 %v586, 2147483648
        %v649 = vxor.u32 %v588, 2147483648
        %v650 = vxor.u32 %v592, 2147483648
        %v651 = vxor.u32 %v594, 2147483648
        %v652 = vxor.u32 %v598, 2147483648
        %v653 = vxor.u32 %v600, 2147483648
        %v654 = vxor.u32 %v604, 2147483648
        %v655 = vxor.u32 %v606, 2147483648
        %v656 = vxor.u32 %v610, 2147483648
        %v657 = vxor.u32 %v612, 2147483648
        %v658 = vxor.u32 %v616, 2147483648
        %v659 = vxor.u32 %v618, 2147483648
        %v660 = vxor.u32 %v622, 2147483648
        %v661 = vxor.u32 %v624, 2147483648
        %v662 = vxor.u32 %v628, 2147483648
        %v663 = vxor.u32 %v630, 2147483648
        %v664 = vmul.f32 %v632, 1.442695
        %v665 = vpow.pop %v664
        %v666 = vmul.f32 %v633, 1.442695
        %v667 = vpow.pop %v666
        %v668 = vmul.f32 %v634, 1.442695
        %v669 = vpow.pop %v668
        %v670 = vmul.f32 %v635, 1.442695
        %v671 = vpow.pop %v670
        %v672 = vmul.f32 %v636, 1.442695
        %v673 = vpow.pop %v672
        %v674 = vmul.f32 %v637, 1.442695
        %v675 = vpow.pop %v674
        %v676 = vmul.f32 %v638, 1.442695
        %v677 = vpow.pop %v676
        %v678 = vmul.f32 %v639, 1.442695
        %v679 = vpow.pop %v678
        %v680 = vmul.f32 %v640, 1.442695
        %v681 = vpow.pop %v680
        %v682 = vmul.f32 %v641, 1.442695
        %v683 = vpow.pop %v682
        %v684 = vmul.f32 %v642, 1.442695
        %v685 = vpow.pop %v684
        %v686 = vmul.f32 %v643, 1.442695
        %v687 = vpow.pop %v686
        %v688 = vmul.f32 %v644, 1.442695
        %v689 = vpow.pop %v688
        %v690 = vmul.f32 %v645, 1.442695
        %v691 = vpow.pop %v690
        %v692 = vmul.f32 %v646, 1.442695
        %v693 = vpow.pop %v692
        %v694 = vmul.f32 %v647, 1.442695
        %v695 = vpow.pop %v694
        %v696 = vmul.f32 %v648, 1.442695
        %v697 = vpow.pop %v696
        %v698 = vmul.f32 %v649, 1.442695
        %v699 = vpow.pop %v698
        %v700 = vmul.f32 %v650, 1.442695
        %v701 = vpow.pop %v700
        %v702 = vmul.f32 %v651, 1.442695
        %v703 = vpow.pop %v702
        %v704 = vmul.f32 %v652, 1.442695
        %v705 = vpow.pop %v704
        %v706 = vmul.f32 %v653, 1.442695
        %v707 = vpow.pop %v706
        %v708 = vmul.f32 %v654, 1.442695
        %v709 = vpow.pop %v708
        %v710 = vmul.f32 %v655, 1.442695
        %v711 = vpow.pop %v710
        %v712 = vmul.f32 %v656, 1.442695
        %v713 = vpow.pop %v712
        %v714 = vmul.f32 %v657, 1.442695
        %v715 = vpow.pop %v714
        %v716 = vmul.f32 %v658, 1.442695
        %v717 = vpow.pop %v716
        %v718 = vmul.f32 %v659, 1.442695
        %v719 = vpow.pop %v718
        %v720 = vmul.f32 %v660, 1.442695
        %v721 = vpow.pop %v720
        %v722 = vmul.f32 %v661, 1.442695
        %v723 = vpow.pop %v722
        %v724 = vmul.f32 %v662, 1.442695
        %v725 = vpow.pop %v724
        %v726 = vmul.f32 %v663, 1.442695
        %v727 = vpow.pop %v726
        %v728 = vadd.f32 %v665, 1.0
        %v729 = vadd.f32 %v667, 1.0
        %v730 = vadd.f32 %v669, 1.0
        %v731 = vadd.f32 %v671, 1.0
        %v732 = vadd.f32 %v673, 1.0
        %v733 = vadd.f32 %v675, 1.0
        %v734 = vadd.f32 %v677, 1.0
        %v735 = vadd.f32 %v679, 1.0
        %v736 = vadd.f32 %v681, 1.0
        %v737 = vadd.f32 %v683, 1.0
        %v738 = vadd.f32 %v685, 1.0
        %v739 = vadd.f32 %v687, 1.0
        %v740 = vadd.f32 %v689, 1.0
        %v741 = vadd.f32 %v691, 1.0
        %v742 = vadd.f32 %v693, 1.0
        %v743 = vadd.f32 %v695, 1.0
        %v744 = vadd.f32 %v697, 1.0
        %v745 = vadd.f32 %v699, 1.0
        %v746 = vadd.f32 %v701, 1.0
        %v747 = vadd.f32 %v703, 1.0
        %v748 = vadd.f32 %v705, 1.0
        %v749 = vadd.f32 %v707, 1.0
        %v750 = vadd.f32 %v709, 1.0
        %v751 = vadd.f32 %v711, 1.0
        %v752 = vadd.f32 %v713, 1.0
        %v753 = vadd.f32 %v715, 1.0
        %v754 = vadd.f32 %v717, 1.0
        %v755 = vadd.f32 %v719, 1.0
        %v756 = vadd.f32 %v721, 1.0
        %v757 = vadd.f32 %v723, 1.0
        %v758 = vadd.f32 %v725, 1.0
        %v759 = vadd.f32 %v727, 1.0
        %v760 = vrcp.pop %v728
        %v761 = vmul.f32 1.0, %v760
        %v762 = vrcp.pop %v729
        %v763 = vmul.f32 1.0, %v762
        %v764 = vrcp.pop %v730
        %v765 = vmul.f32 1.0, %v764
        %v766 = vrcp.pop %v731
        %v767 = vmul.f32 1.0, %v766
        %v768 = vrcp.pop %v732
        %v769 = vmul.f32 1.0, %v768
        %v770 = vrcp.pop %v733
        %v771 = vmul.f32 1.0, %v770
        %v772 = vrcp.pop %v734
        %v773 = vmul.f32 1.0, %v772
        %v774 = vrcp.pop %v735
        %v775 = vmul.f32 1.0, %v774
        %v776 = vrcp.pop %v736
        %v777 = vmul.f32 1.0, %v776
        %v778 = vrcp.pop %v737
        %v779 = vmul.f32 1.0, %v778
        %v780 = vrcp.pop %v738
        %v781 = vmul.f32 1.0, %v780
        %v782 = vrcp.pop %v739
        %v783 = vmul.f32 1.0, %v782
        %v784 = vrcp.pop %v740
        %v785 = vmul.f32 1.0, %v784
        %v786 = vrcp.pop %v741
        %v787 = vmul.f32 1.0, %v786
        %v788 = vrcp.pop %v742
        %v789 = vmul.f32 1.0, %v788
        %v790 = vrcp.pop %v743
        %v791 = vmul.f32 1.0, %v790
        %v792 = vrcp.pop %v744
        %v793 = vmul.f32 1.0, %v792
        %v794 = vrcp.pop %v745
        %v795 = vmul.f32 1.0, %v794
        %v796 = vrcp.pop %v746
        %v797 = vmul.f32 1.0, %v796
        %v798 = vrcp.pop %v747
        %v799 = vmul.f32 1.0, %v798
        %v800 = vrcp.pop %v748
        %v801 = vmul.f32 1.0, %v800
        %v802 = vrcp.pop %v749
        %v803 = vmul.f32 1.0, %v802
        %v804 = vrcp.pop %v750
        %v805 = vmul.f32 1.0, %v804
        %v806 = vrcp.pop %v751
        %v807 = vmul.f32 1.0, %v806
        %v808 = vrcp.pop %v752
        %v809 = vmul.f32 1.0, %v808
        %v810 = vrcp.pop %v753
        %v811 = vmul.f32 1.0, %v810
        %v812 = vrcp.pop %v754
        %v813 = vmul.f32 1.0, %v812
        %v814 = vrcp.pop %v755
        %v815 = vmul.f32 1.0, %v814
        %v816 = vrcp.pop %v756
        %v817 = vmul.f32 1.0, %v816
        %v818 = vrcp.pop %v757
        %v819 = vmul.f32 1.0, %v818
        %v820 = vrcp.pop %v758
        %v821 = vmul.f32 1.0, %v820
        %v822 = vrcp.pop %v759
        %v823 = vmul.f32 1.0, %v822
        %v824 = vmul.f32 %v538, %v761
        %v825 = vmul.f32 %v540, %v763
        %v826 = vmul.f32 %v544, %v765
        %v827 = vmul.f32 %v546, %v767
        %v828 = vmul.f32 %v550, %v769
        %v829 = vmul.f32 %v552, %v771
        %v830 = vmul.f32 %v556, %v773
        %v831 = vmul.f32 %v558, %v775
        %v832 = vmul.f32 %v562, %v777
        %v833 = vmul.f32 %v564, %v779
        %v834 = vmul.f32 %v568, %v781
        %v835 = vmul.f32 %v570, %v783
        %v836 = vmul.f32 %v574, %v785
        %v837 = vmul.f32 %v576, %v787
        %v838 = vmul.f32 %v580, %v789
        %v839 = vmul.f32 %v582, %v791
        %v840 = vmul.f32 %v586, %v793
        %v841 = vmul.f32 %v588, %v795
        %v842 = vmul.f32 %v592, %v797
        %v843 = vmul.f32 %v594, %v799
        %v844 = vmul.f32 %v598, %v801
        %v845 = vmul.f32 %v600, %v803
        %v846 = vmul.f32 %v604, %v805
        %v847 = vmul.f32 %v606, %v807
        %v848 = vmul.f32 %v610, %v809
        %v849 = vmul.f32 %v612, %v811
        %v850 = vmul.f32 %v616, %v813
        %v851 = vmul.f32 %v618, %v815
        %v852 = vmul.f32 %v622, %v817
        %v853 = vmul.f32 %v624, %v819
        %v854 = vmul.f32 %v628, %v821
        %v855 = vmul.f32 %v630, %v823
        %v856 = vld [vmem:[#allocation7] sm:$0xff]
        %v857 = vld [vmem:[#allocation7 + $0x8] sm:$0xff]
        %v858 = vld [vmem:[#allocation7 + $0x10] sm:$0xff]
        %v859 = vld [vmem:[#allocation7 + $0x18] sm:$0xff]
        %v860 = vld [vmem:[#allocation7 + $0x20] sm:$0xff]
        %v861 = vld [vmem:[#allocation7 + $0x28] sm:$0xff]
        %v862 = vld [vmem:[#allocation7 + $0x30] sm:$0xff]
        %v863 = vld [vmem:[#allocation7 + $0x38] sm:$0xff]
        %v864 = vld [vmem:[#allocation7 + $0x40] sm:$0xff]
        %v865 = vld [vmem:[#allocation7 + $0x48] sm:$0xff]
        %v866 = vld [vmem:[#allocation7 + $0x50] sm:$0xff]
        %v867 = vld [vmem:[#allocation7 + $0x58] sm:$0xff]
        %v868 = vld [vmem:[#allocation7 + $0x60] sm:$0xff]
        %v869 = vld [vmem:[#allocation7 + $0x68] sm:$0xff]
        %v870 = vld [vmem:[#allocation7 + $0x70] sm:$0xff]
        %v871 = vld [vmem:[#allocation7 + $0x78] sm:$0xff]
        %v872 = vld [vmem:[#allocation7 + $0x80] sm:$0xff]
        %v873 = vld [vmem:[#allocation7 + $0x88] sm:$0xff]
        %v874 = vld [vmem:[#allocation7 + $0x90] sm:$0xff]
        %v875 = vld [vmem:[#allocation7 + $0x98] sm:$0xff]
        %v876 = vld [vmem:[#allocation7 + $0xa0] sm:$0xff]
        %v877 = vld [vmem:[#allocation7 + $0xa8] sm:$0xff]
        %v878 = vld [vmem:[#allocation7 + $0xb0] sm:$0xff]
        %v879 = vld [vmem:[#allocation7 + $0xb8] sm:$0xff]
        %v880 = vld [vmem:[#allocation7 + $0xc0] sm:$0xff]
        %v881 = vld [vmem:[#allocation7 + $0xc8] sm:$0xff]
        %v882 = vld [vmem:[#allocation7 + $0xd0] sm:$0xff]
        %v883 = vld [vmem:[#allocation7 + $0xd8] sm:$0xff]
        %v884 = vld [vmem:[#allocation7 + $0xe0] sm:$0xff]
        %v885 = vld [vmem:[#allocation7 + $0xe8] sm:$0xff]
        %v886 = vld [vmem:[#allocation7 + $0xf0] sm:$0xff]
        %v887 = vld [vmem:[#allocation7 + $0xf8] sm:$0xff]
        %v888 = vld [vmem:[#allocation7 + $0x100] sm:$0xff]
        %v889 = vld [vmem:[#allocation7 + $0x108] sm:$0xff]
        %v890 = vld [vmem:[#allocation7 + $0x110] sm:$0xff]
        %v891 = vld [vmem:[#allocation7 + $0x118] sm:$0xff]
        %v892 = vld [vmem:[#allocation7 + $0x120] sm:$0xff]
        %v893 = vld [vmem:[#allocation7 + $0x128] sm:$0xff]
        %v894 = vld [vmem:[#allocation7 + $0x130] sm:$0xff]
        %v895 = vld [vmem:[#allocation7 + $0x138] sm:$0xff]
        %v896 = vld [vmem:[#allocation7 + $0x140] sm:$0xff]
        %v897 = vld [vmem:[#allocation7 + $0x148] sm:$0xff]
        %v898 = vld [vmem:[#allocation7 + $0x150] sm:$0xff]
        %v899 = vld [vmem:[#allocation7 + $0x158] sm:$0xff]
        %v900 = vld [vmem:[#allocation7 + $0x160] sm:$0xff]
        %v901 = vld [vmem:[#allocation7 + $0x168] sm:$0xff]
        %v902 = vld [vmem:[#allocation7 + $0x170] sm:$0xff]
        %v903 = vld [vmem:[#allocation7 + $0x178] sm:$0xff]
        %v904 = vld [vmem:[#allocation7 + $0x180] sm:$0xff]
        %v905 = vld [vmem:[#allocation7 + $0x188] sm:$0xff]
        %v906 = vld [vmem:[#allocation7 + $0x190] sm:$0xff]
        %v907 = vld [vmem:[#allocation7 + $0x198] sm:$0xff]
        %v908 = vld [vmem:[#allocation7 + $0x1a0] sm:$0xff]
        %v909 = vld [vmem:[#allocation7 + $0x1a8] sm:$0xff]
        %v910 = vld [vmem:[#allocation7 + $0x1b0] sm:$0xff]
        %v911 = vld [vmem:[#allocation7 + $0x1b8] sm:$0xff]
        %v912 = vld [vmem:[#allocation7 + $0x1c0] sm:$0xff]
        %v913 = vld [vmem:[#allocation7 + $0x1c8] sm:$0xff]
        %v914 = vld [vmem:[#allocation7 + $0x1d0] sm:$0xff]
        %v915 = vld [vmem:[#allocation7 + $0x1d8] sm:$0xff]
        %v916 = vld [vmem:[#allocation7 + $0x1e0] sm:$0xff]
        %v917 = vld [vmem:[#allocation7 + $0x1e8] sm:$0xff]
        %v918 = vld [vmem:[#allocation7 + $0x1f0] sm:$0xff]
        %v919 = vld [vmem:[#allocation7 + $0x1f8] sm:$0xff]
        %v920 = vld [vmem:[%s4] sm:$0x3]
        %v922 = vlaneseq
        %v923 = vshrl.u32 %v922, 7
        %v924 = vsub.s32 0, %v923
        %v925 = vrot.slane %v920, %v924
        %v926 = vlaneseq
        %v927 = vshrl.u32 %v926, 7
        %v928 = vsub.s32 1, %v927
        %v929 = vrot.slane %v920, %v928
        %932 = vmatprep.subr.mxu0 %v857
        %933 = vmatpush1.msra.mxu0 %v856
        %934 = vmatprep.subr.mxu0 %v859
        %935 = vmatpush1.msra.mxu0 %v858
        %936 = vmatprep.subr.mxu0 %v861
        %937 = vmatpush1.msra.mxu0 %v860
        %938 = vmatprep.subr.mxu0 %v863
        %939 = vmatpush1.msra.mxu0 %v862
        %940 = vmatprep.subr.mxu0 %v865
        %941 = vmatpush1.msra.mxu0 %v864
        %942 = vmatprep.subr.mxu0 %v867
        %943 = vmatpush1.msra.mxu0 %v866
        %944 = vmatprep.subr.mxu0 %v869
        %945 = vmatpush1.msra.mxu0 %v868
        %946 = vmatprep.subr.mxu0 %v871
        %947 = vmatpush1.msra.mxu0 %v870
        %948 = vmatprep.subr.mxu0 %v873
        %949 = vmatpush1.msra.mxu0 %v872
        %950 = vmatprep.subr.mxu0 %v875
        %951 = vmatpush1.msra.mxu0 %v874
        %952 = vmatprep.subr.mxu0 %v877
        %953 = vmatpush1.msra.mxu0 %v876
        %954 = vmatprep.subr.mxu0 %v879
        %955 = vmatpush1.msra.mxu0 %v878
        %956 = vmatprep.subr.mxu0 %v881
        %957 = vmatpush1.msra.mxu0 %v880
        %958 = vmatprep.subr.mxu0 %v883
        %959 = vmatpush1.msra.mxu0 %v882
        %960 = vmatprep.subr.mxu0 %v885
        %961 = vmatpush1.msra.mxu0 %v884
        %962 = vmatprep.subr.mxu0 %v887
        %963 = vmatpush1.msra.mxu0 %v886
        %964 = vmatprep.subr.mxu0 %v889
        %965 = vmatpush1.msra.mxu0 %v888
        %966 = vmatprep.subr.mxu0 %v891
        %967 = vmatpush1.msra.mxu0 %v890
        %968 = vmatprep.subr.mxu0 %v893
        %969 = vmatpush1.msra.mxu0 %v892
        %970 = vmatprep.subr.mxu0 %v895
        %971 = vmatpush1.msra.mxu0 %v894
        %972 = vmatprep.subr.mxu0 %v897
        %973 = vmatpush1.msra.mxu0 %v896
        %974 = vmatprep.subr.mxu0 %v899
        %975 = vmatpush1.msra.mxu0 %v898
        %976 = vmatprep.subr.mxu0 %v901
        %977 = vmatpush1.msra.mxu0 %v900
        %978 = vmatprep.subr.mxu0 %v903
        %979 = vmatpush1.msra.mxu0 %v902
        %980 = vmatprep.subr.mxu0 %v905
        %981 = vmatpush1.msra.mxu0 %v904
        %982 = vmatprep.subr.mxu0 %v907
        %983 = vmatpush1.msra.mxu0 %v906
        %984 = vmatprep.subr.mxu0 %v909
        %985 = vmatpush1.msra.mxu0 %v908
        %986 = vmatprep.subr.mxu0 %v911
        %987 = vmatpush1.msra.mxu0 %v910
        %988 = vmatprep.subr.mxu0 %v913
        %989 = vmatpush1.msra.mxu0 %v912
        %990 = vmatprep.subr.mxu0 %v915
        %991 = vmatpush1.msra.mxu0 %v914
        %992 = vmatprep.subr.mxu0 %v917
        %993 = vmatpush1.msra.mxu0 %v916
        %994 = vmatprep.subr.mxu0 %v919
        %995 = vmatpush1.msra.mxu0 %v918
        %996 = vmatprep.mubr.f32.mxu0 %v825
        %997 = vmatmul.mubr.f32.gmra.mrb[0].mxu0 %v824
        %v998 = vpop.f32.mrb[0].mxu0
        %v999 = vadd.f32 %v925, %v998
        %v1000 = vpop.f32.mrb[0].mxu0
        %v1001 = vadd.f32 %v929, %v1000
        %1002 = vmatprep.mubr.f32.mxu0 %v827
        %1003 = vmatmul.mubr.f32.gmra.mrb[0].mxu0 %v826
        %v1004 = vpop.f32.mrb[0].mxu0
        %v1005 = vadd.f32 %v925, %v1004
        %v1006 = vpop.f32.mrb[0].mxu0
        %v1007 = vadd.f32 %v929, %v1006
        %1008 = vmatprep.mubr.f32.mxu0 %v829
        %1009 = vmatmul.mubr.f32.gmra.mrb[0].mxu0 %v828
        %v1010 = vpop.f32.mrb[0].mxu0
        %v1011 = vadd.f32 %v925, %v1010
        %v1012 = vpop.f32.mrb[0].mxu0
        %v1013 = vadd.f32 %v929, %v1012
        %1014 = vmatprep.mubr.f32.mxu0 %v831
        %1015 = vmatmul.mubr.f32.gmra.mrb[0].mxu0 %v830
        %v1016 = vpop.f32.mrb[0].mxu0
        %v1017 = vadd.f32 %v925, %v1016
        %v1018 = vpop.f32.mrb[0].mxu0
        %v1019 = vadd.f32 %v929, %v1018
        %1020 = vmatprep.mubr.f32.mxu0 %v833
        %1021 = vmatmul.mubr.f32.gmra.mrb[0].mxu0 %v832
        %v1022 = vpop.f32.mrb[0].mxu0
        %v1023 = vadd.f32 %v925, %v1022
        %v1024 = vpop.f32.mrb[0].mxu0
        %v1025 = vadd.f32 %v929, %v1024
        %1026 = vmatprep.mubr.f32.mxu0 %v835
        %1027 = vmatmul.mubr.f32.gmra.mrb[0].mxu0 %v834
        %v1028 = vpop.f32.mrb[0].mxu0
        %v1029 = vadd.f32 %v925, %v1028
        %v1030 = vpop.f32.mrb[0].mxu0
        %v1031 = vadd.f32 %v929, %v1030
        %1032 = vmatprep.mubr.f32.mxu0 %v837
        %1033 = vmatmul.mubr.f32.gmra.mrb[0].mxu0 %v836
        %v1034 = vpop.f32.mrb[0].mxu0
        %v1035 = vadd.f32 %v925, %v1034
        %v1036 = vpop.f32.mrb[0].mxu0
        %v1037 = vadd.f32 %v929, %v1036
        %1038 = vmatprep.mubr.f32.mxu0 %v839
        %1039 = vmatmul.mubr.f32.gmra.mrb[0].mxu0 %v838
        %v1040 = vpop.f32.mrb[0].mxu0
        %v1041 = vadd.f32 %v925, %v1040
        %v1042 = vpop.f32.mrb[0].mxu0
        %v1043 = vadd.f32 %v929, %v1042
        %1044 = vmatprep.mubr.f32.mxu0 %v841
        %1045 = vmatmul.mubr.f32.gmra.mrb[0].mxu0 %v840
        %v1046 = vpop.f32.mrb[0].mxu0
        %v1047 = vadd.f32 %v925, %v1046
        %v1048 = vpop.f32.mrb[0].mxu0
        %v1049 = vadd.f32 %v929, %v1048
        %1050 = vmatprep.mubr.f32.mxu0 %v843
        %1051 = vmatmul.mubr.f32.gmra.mrb[0].mxu0 %v842
        %v1052 = vpop.f32.mrb[0].mxu0
        %v1053 = vadd.f32 %v925, %v1052
        %v1054 = vpop.f32.mrb[0].mxu0
        %v1055 = vadd.f32 %v929, %v1054
        %1056 = vmatprep.mubr.f32.mxu0 %v845
        %1057 = vmatmul.mubr.f32.gmra.mrb[0].mxu0 %v844
        %v1058 = vpop.f32.mrb[0].mxu0
        %v1059 = vadd.f32 %v925, %v1058
        %v1060 = vpop.f32.mrb[0].mxu0
        %v1061 = vadd.f32 %v929, %v1060
        %1062 = vmatprep.mubr.f32.mxu0 %v847
        %1063 = vmatmul.mubr.f32.gmra.mrb[0].mxu0 %v846
        %v1064 = vpop.f32.mrb[0].mxu0
        %v1065 = vadd.f32 %v925, %v1064
        %v1066 = vpop.f32.mrb[0].mxu0
        %v1067 = vadd.f32 %v929, %v1066
        %1068 = vmatprep.mubr.f32.mxu0 %v849
        %1069 = vmatmul.mubr.f32.gmra.mrb[0].mxu0 %v848
        %v1070 = vpop.f32.mrb[0].mxu0
        %v1071 = vadd.f32 %v925, %v1070
        %v1072 = vpop.f32.mrb[0].mxu0
        %v1073 = vadd.f32 %v929, %v1072
        %1074 = vmatprep.mubr.f32.mxu0 %v851
        %1075 = vmatmul.mubr.f32.gmra.mrb[0].mxu0 %v850
        %v1076 = vpop.f32.mrb[0].mxu0
        %v1077 = vadd.f32 %v925, %v1076
        %v1078 = vpop.f32.mrb[0].mxu0
        %v1079 = vadd.f32 %v929, %v1078
        %1080 = vmatprep.mubr.f32.mxu0 %v853
        %1081 = vmatmul.mubr.f32.gmra.mrb[0].mxu0 %v852
        %v1082 = vpop.f32.mrb[0].mxu0
        %v1083 = vadd.f32 %v925, %v1082
        %v1084 = vpop.f32.mrb[0].mxu0
        %v1085 = vadd.f32 %v929, %v1084
        %1086 = vmatprep.mubr.f32.mxu0 %v855
        %1087 = vmatmul.mubr.f32.gmra.mrb[0].mxu0 %v854
        %v1088 = vpop.f32.mrb[0].mxu0
        %v1089 = vadd.f32 %v925, %v1088
        %v1090 = vpop.f32.mrb[0].mxu0
        %v1091 = vadd.f32 %v929, %v1090
        %1092 = vdwg.mxu0
        %v1093 = vmul.f32 %v999, 0.5
        %v1094 = vmul.f32 %v1001, 0.5
        %v1095 = vmul.f32 %v1005, 0.5
        %v1096 = vmul.f32 %v1007, 0.5
        %v1097 = vmul.f32 %v1011, 0.5
        %v1098 = vmul.f32 %v1013, 0.5
        %v1099 = vmul.f32 %v1017, 0.5
        %v1100 = vmul.f32 %v1019, 0.5
        %v1101 = vmul.f32 %v1023, 0.5
        %v1102 = vmul.f32 %v1025, 0.5
        %v1103 = vmul.f32 %v1029, 0.5
        %v1104 = vmul.f32 %v1031, 0.5
        %v1105 = vmul.f32 %v1035, 0.5
        %v1106 = vmul.f32 %v1037, 0.5
        %v1107 = vmul.f32 %v1041, 0.5
        %v1108 = vmul.f32 %v1043, 0.5
        %v1109 = vmul.f32 %v1047, 0.5
        %v1110 = vmul.f32 %v1049, 0.5
        %v1111 = vmul.f32 %v1053, 0.5
        %v1112 = vmul.f32 %v1055, 0.5
        %v1113 = vmul.f32 %v1059, 0.5
        %v1114 = vmul.f32 %v1061, 0.5
        %v1115 = vmul.f32 %v1065, 0.5
        %v1116 = vmul.f32 %v1067, 0.5
        %v1117 = vmul.f32 %v1071, 0.5
        %v1118 = vmul.f32 %v1073, 0.5
        %v1119 = vmul.f32 %v1077, 0.5
        %v1120 = vmul.f32 %v1079, 0.5
        %v1121 = vmul.f32 %v1083, 0.5
        %v1122 = vmul.f32 %v1085, 0.5
        %v1123 = vmul.f32 %v1089, 0.5
        %v1124 = vmul.f32 %v1091, 0.5
        %v1125 = vmul.f32 %v999, 0.70710677
        %v1126 = vmul.f32 %v1001, 0.70710677
        %v1127 = vmul.f32 %v1005, 0.70710677
        %v1128 = vmul.f32 %v1007, 0.70710677
        %v1129 = vmul.f32 %v1011, 0.70710677
        %v1130 = vmul.f32 %v1013, 0.70710677
        %v1131 = vmul.f32 %v1017, 0.70710677
        %v1132 = vmul.f32 %v1019, 0.70710677
        %v1133 = vmul.f32 %v1023, 0.70710677
        %v1134 = vmul.f32 %v1025, 0.70710677
        %v1135 = vmul.f32 %v1029, 0.70710677
        %v1136 = vmul.f32 %v1031, 0.70710677
        %v1137 = vmul.f32 %v1035, 0.70710677
        %v1138 = vmul.f32 %v1037, 0.70710677
        %v1139 = vmul.f32 %v1041, 0.70710677
        %v1140 = vmul.f32 %v1043, 0.70710677
        %v1141 = vmul.f32 %v1047, 0.70710677
        %v1142 = vmul.f32 %v1049, 0.70710677
        %v1143 = vmul.f32 %v1053, 0.70710677
        %v1144 = vmul.f32 %v1055, 0.70710677
        %v1145 = vmul.f32 %v1059, 0.70710677
        %v1146 = vmul.f32 %v1061, 0.70710677
        %v1147 = vmul.f32 %v1065, 0.70710677
        %v1148 = vmul.f32 %v1067, 0.70710677
        %v1149 = vmul.f32 %v1071, 0.70710677
        %v1150 = vmul.f32 %v1073, 0.70710677
        %v1151 = vmul.f32 %v1077, 0.70710677
        %v1152 = vmul.f32 %v1079, 0.70710677
        %v1153 = vmul.f32 %v1083, 0.70710677
        %v1154 = vmul.f32 %v1085, 0.70710677
        %v1155 = vmul.f32 %v1089, 0.70710677
        %v1156 = vmul.f32 %v1091, 0.70710677
        %v1157 = verf.f32.pop %v1125
        %v1158 = verf.f32.pop %v1126
        %v1159 = verf.f32.pop %v1127
        %v1160 = verf.f32.pop %v1128
        %v1161 = verf.f32.pop %v1129
        %v1162 = verf.f32.pop %v1130
        %v1163 = verf.f32.pop %v1131
        %v1164 = verf.f32.pop %v1132
        %v1165 = verf.f32.pop %v1133
        %v1166 = verf.f32.pop %v1134
        %v1167 = verf.f32.pop %v1135
        %v1168 = verf.f32.pop %v1136
        %v1169 = verf.f32.pop %v1137
        %v1170 = verf.f32.pop %v1138
        %v1171 = verf.f32.pop %v1139
        %v1172 = verf.f32.pop %v1140
        %v1173 = verf.f32.pop %v1141
        %v1174 = verf.f32.pop %v1142
        %v1175 = verf.f32.pop %v1143
        %v1176 = verf.f32.pop %v1144
        %v1177 = verf.f32.pop %v1145
        %v1178 = verf.f32.pop %v1146
        %v1179 = verf.f32.pop %v1147
        %v1180 = verf.f32.pop %v1148
        %v1181 = verf.f32.pop %v1149
        %v1182 = verf.f32.pop %v1150
        %v1183 = verf.f32.pop %v1151
        %v1184 = verf.f32.pop %v1152
        %v1185 = verf.f32.pop %v1153
        %v1186 = verf.f32.pop %v1154
        %v1187 = verf.f32.pop %v1155
        %v1188 = verf.f32.pop %v1156
        %v1189 = vadd.f32 %v1157, 1.0
        %v1190 = vadd.f32 %v1158, 1.0
        %v1191 = vadd.f32 %v1159, 1.0
        %v1192 = vadd.f32 %v1160, 1.0
        %v1193 = vadd.f32 %v1161, 1.0
        %v1194 = vadd.f32 %v1162, 1.0
        %v1195 = vadd.f32 %v1163, 1.0
        %v1196 = vadd.f32 %v1164, 1.0
        %v1197 = vadd.f32 %v1165, 1.0
        %v1198 = vadd.f32 %v1166, 1.0
        %v1199 = vadd.f32 %v1167, 1.0
        %v1200 = vadd.f32 %v1168, 1.0
        %v1201 = vadd.f32 %v1169, 1.0
        %v1202 = vadd.f32 %v1170, 1.0
        %v1203 = vadd.f32 %v1171, 1.0
        %v1204 = vadd.f32 %v1172, 1.0
        %v1205 = vadd.f32 %v1173, 1.0
        %v1206 = vadd.f32 %v1174, 1.0
        %v1207 = vadd.f32 %v1175, 1.0
        %v1208 = vadd.f32 %v1176, 1.0
        %v1209 = vadd.f32 %v1177, 1.0
        %v1210 = vadd.f32 %v1178, 1.0
        %v1211 = vadd.f32 %v1179, 1.0
        %v1212 = vadd.f32 %v1180, 1.0
        %v1213 = vadd.f32 %v1181, 1.0
        %v1214 = vadd.f32 %v1182, 1.0
        %v1215 = vadd.f32 %v1183, 1.0
        %v1216 = vadd.f32 %v1184, 1.0
        %v1217 = vadd.f32 %v1185, 1.0
        %v1218 = vadd.f32 %v1186, 1.0
        %v1219 = vadd.f32 %v1187, 1.0
        %v1220 = vadd.f32 %v1188, 1.0
        %v1221 = vmul.f32 %v1093, %v1189
        %v1222 = vmul.f32 %v1094, %v1190
        %v1223 = vmul.f32 %v1095, %v1191
        %v1224 = vmul.f32 %v1096, %v1192
        %v1225 = vmul.f32 %v1097, %v1193
        %v1226 = vmul.f32 %v1098, %v1194
        %v1227 = vmul.f32 %v1099, %v1195
        %v1228 = vmul.f32 %v1100, %v1196
        %v1229 = vmul.f32 %v1101, %v1197
        %v1230 = vmul.f32 %v1102, %v1198
        %v1231 = vmul.f32 %v1103, %v1199
        %v1232 = vmul.f32 %v1104, %v1200
        %v1233 = vmul.f32 %v1105, %v1201
        %v1234 = vmul.f32 %v1106, %v1202
        %v1235 = vmul.f32 %v1107, %v1203
        %v1236 = vmul.f32 %v1108, %v1204
        %v1237 = vmul.f32 %v1109, %v1205
        %v1238 = vmul.f32 %v1110, %v1206
        %v1239 = vmul.f32 %v1111, %v1207
        %v1240 = vmul.f32 %v1112, %v1208
        %v1241 = vmul.f32 %v1113, %v1209
        %v1242 = vmul.f32 %v1114, %v1210
        %v1243 = vmul.f32 %v1115, %v1211
        %v1244 = vmul.f32 %v1116, %v1212
        %v1245 = vmul.f32 %v1117, %v1213
        %v1246 = vmul.f32 %v1118, %v1214
        %v1247 = vmul.f32 %v1119, %v1215
        %v1248 = vmul.f32 %v1120, %v1216
        %v1249 = vmul.f32 %v1121, %v1217
        %v1250 = vmul.f32 %v1122, %v1218
        %v1251 = vmul.f32 %v1123, %v1219
        %v1252 = vmul.f32 %v1124, %v1220
        %v1253 = vld [vmem:[#allocation8] sm:$0xff]
        %v1254 = vld [vmem:[#allocation8 + $0x8] sm:$0xff]
        %v1255 = vld [vmem:[#allocation8 + $0x10] sm:$0xff]
        %v1256 = vld [vmem:[#allocation8 + $0x18] sm:$0xff]
        %v1257 = vld [vmem:[#allocation8 + $0x20] sm:$0xff]
        %v1258 = vld [vmem:[#allocation8 + $0x28] sm:$0xff]
        %v1259 = vld [vmem:[#allocation8 + $0x30] sm:$0xff]
        %v1260 = vld [vmem:[#allocation8 + $0x38] sm:$0xff]
        %v1261 = vld [vmem:[#allocation8 + $0x40] sm:$0xff]
        %v1262 = vld [vmem:[#allocation8 + $0x48] sm:$0xff]
        %v1263 = vld [vmem:[#allocation8 + $0x50] sm:$0xff]
        %v1264 = vld [vmem:[#allocation8 + $0x58] sm:$0xff]
        %v1265 = vld [vmem:[#allocation8 + $0x60] sm:$0xff]
        %v1266 = vld [vmem:[#allocation8 + $0x68] sm:$0xff]
        %v1267 = vld [vmem:[#allocation8 + $0x70] sm:$0xff]
        %v1268 = vld [vmem:[#allocation8 + $0x78] sm:$0xff]
        %v1269 = vld [vmem:[#allocation8 + $0x80] sm:$0xff]
        %v1270 = vld [vmem:[#allocation8 + $0x88] sm:$0xff]
        %v1271 = vld [vmem:[#allocation8 + $0x90] sm:$0xff]
        %v1272 = vld [vmem:[#allocation8 + $0x98] sm:$0xff]
        %v1273 = vld [vmem:[#allocation8 + $0xa0] sm:$0xff]
        %v1274 = vld [vmem:[#allocation8 + $0xa8] sm:$0xff]
        %v1275 = vld [vmem:[#allocation8 + $0xb0] sm:$0xff]
        %v1276 = vld [vmem:[#allocation8 + $0xb8] sm:$0xff]
        %v1277 = vld [vmem:[#allocation8 + $0xc0] sm:$0xff]
        %v1278 = vld [vmem:[#allocation8 + $0xc8] sm:$0xff]
        %v1279 = vld [vmem:[#allocation8 + $0xd0] sm:$0xff]
        %v1280 = vld [vmem:[#allocation8 + $0xd8] sm:$0xff]
        %v1281 = vld [vmem:[#allocation8 + $0xe0] sm:$0xff]
        %v1282 = vld [vmem:[#allocation8 + $0xe8] sm:$0xff]
        %v1283 = vld [vmem:[#allocation8 + $0xf0] sm:$0xff]
        %v1284 = vld [vmem:[#allocation8 + $0xf8] sm:$0xff]
        %v1285 = vld [vmem:[%s6] sm:$0x1]
        %v1287 = vlaneseq
        %v1288 = vshrl.u32 %v1287, 7
        %v1289 = vsub.s32 0, %v1288
        %v1290 = vrot.slane %v1285, %v1289
        %1292 = vmatprep.subr.mxu0 0.0
        %1293 = vmatpush1.msra.mxu0 %v1253
        %1294 = vmatprep.subr.mxu0 0.0
        %1295 = vmatpush1.msra.mxu0 %v1254
        %1296 = vmatprep.subr.mxu0 0.0
        %1297 = vmatpush1.msra.mxu0 %v1255
        %1298 = vmatprep.subr.mxu0 0.0
        %1299 = vmatpush1.msra.mxu0 %v1256
        %1300 = vmatprep.subr.mxu0 0.0
        %1301 = vmatpush1.msra.mxu0 %v1257
        %1302 = vmatprep.subr.mxu0 0.0
        %1303 = vmatpush1.msra.mxu0 %v1258
        %1304 = vmatprep.subr.mxu0 0.0
        %1305 = vmatpush1.msra.mxu0 %v1259
        %1306 = vmatprep.subr.mxu0 0.0
        %1307 = vmatpush1.msra.mxu0 %v1260
        %1308 = vmatprep.subr.mxu0 0.0
        %1309 = vmatpush1.msra.mxu0 %v1261
        %1310 = vmatprep.subr.mxu0 0.0
        %1311 = vmatpush1.msra.mxu0 %v1262
        %1312 = vmatprep.subr.mxu0 0.0
        %1313 = vmatpush1.msra.mxu0 %v1263
        %1314 = vmatprep.subr.mxu0 0.0
        %1315 = vmatpush1.msra.mxu0 %v1264
        %1316 = vmatprep.subr.mxu0 0.0
        %1317 = vmatpush1.msra.mxu0 %v1265
        %1318 = vmatprep.subr.mxu0 0.0
        %1319 = vmatpush1.msra.mxu0 %v1266
        %1320 = vmatprep.subr.mxu0 0.0
        %1321 = vmatpush1.msra.mxu0 %v1267
        %1322 = vmatprep.subr.mxu0 0.0
        %1323 = vmatpush1.msra.mxu0 %v1268
        %1324 = vmatprep.subr.mxu0 0.0
        %1325 = vmatpush1.msra.mxu0 %v1269
        %1326 = vmatprep.subr.mxu0 0.0
        %1327 = vmatpush1.msra.mxu0 %v1270
        %1328 = vmatprep.subr.mxu0 0.0
        %1329 = vmatpush1.msra.mxu0 %v1271
        %1330 = vmatprep.subr.mxu0 0.0
        %1331 = vmatpush1.msra.mxu0 %v1272
        %1332 = vmatprep.subr.mxu0 0.0
        %1333 = vmatpush1.msra.mxu0 %v1273
        %1334 = vmatprep.subr.mxu0 0.0
        %1335 = vmatpush1.msra.mxu0 %v1274
        %1336 = vmatprep.subr.mxu0 0.0
        %1337 = vmatpush1.msra.mxu0 %v1275
        %1338 = vmatprep.subr.mxu0 0.0
        %1339 = vmatpush1.msra.mxu0 %v1276
        %1340 = vmatprep.subr.mxu0 0.0
        %1341 = vmatpush1.msra.mxu0 %v1277
        %1342 = vmatprep.subr.mxu0 0.0
        %1343 = vmatpush1.msra.mxu0 %v1278
        %1344 = vmatprep.subr.mxu0 0.0
        %1345 = vmatpush1.msra.mxu0 %v1279
        %1346 = vmatprep.subr.mxu0 0.0
        %1347 = vmatpush1.msra.mxu0 %v1280
        %1348 = vmatprep.subr.mxu0 0.0
        %1349 = vmatpush1.msra.mxu0 %v1281
        %1350 = vmatprep.subr.mxu0 0.0
        %1351 = vmatpush1.msra.mxu0 %v1282
        %1352 = vmatprep.subr.mxu0 0.0
        %1353 = vmatpush1.msra.mxu0 %v1283
        %1354 = vmatprep.subr.mxu0 0.0
        %1355 = vmatpush1.msra.mxu0 %v1284
        %1356 = vmatprep.mubr.f32.mxu0 %v1222
        %1357 = vmatmul.mubr.f32.gmra.mrb[0].mxu0 %v1221
        %v1358 = vpop.f32.mrb[0].mxu0
        %v1359 = vadd.f32 %v1290, %v1358
        %v1360 = vpop.f32.mrb[0].mxu0
        %1361 = vmatprep.mubr.f32.mxu0 %v1224
        %1362 = vmatmul.mubr.f32.gmra.mrb[0].mxu0 %v1223
        %v1363 = vpop.f32.mrb[0].mxu0
        %v1364 = vadd.f32 %v1290, %v1363
        %v1365 = vpop.f32.mrb[0].mxu0
        %1366 = vmatprep.mubr.f32.mxu0 %v1226
        %1367 = vmatmul.mubr.f32.gmra.mrb[0].mxu0 %v1225
        %v1368 = vpop.f32.mrb[0].mxu0
        %v1369 = vadd.f32 %v1290, %v1368
        %v1370 = vpop.f32.mrb[0].mxu0
        %1371 = vmatprep.mubr.f32.mxu0 %v1228
        %1372 = vmatmul.mubr.f32.gmra.mrb[0].mxu0 %v1227
        %v1373 = vpop.f32.mrb[0].mxu0
        %v1374 = vadd.f32 %v1290, %v1373
        %v1375 = vpop.f32.mrb[0].mxu0
        %1376 = vmatprep.mubr.f32.mxu0 %v1230
        %1377 = vmatmul.mubr.f32.gmra.mrb[0].mxu0 %v1229
        %v1378 = vpop.f32.mrb[0].mxu0
        %v1379 = vadd.f32 %v1290, %v1378
        %v1380 = vpop.f32.mrb[0].mxu0
        %1381 = vmatprep.mubr.f32.mxu0 %v1232
        %1382 = vmatmul.mubr.f32.gmra.mrb[0].mxu0 %v1231
        %v1383 = vpop.f32.mrb[0].mxu0
        %v1384 = vadd.f32 %v1290, %v1383
        %v1385 = vpop.f32.mrb[0].mxu0
        %1386 = vmatprep.mubr.f32.mxu0 %v1234
        %1387 = vmatmul.mubr.f32.gmra.mrb[0].mxu0 %v1233
        %v1388 = vpop.f32.mrb[0].mxu0
        %v1389 = vadd.f32 %v1290, %v1388
        %v1390 = vpop.f32.mrb[0].mxu0
        %1391 = vmatprep.mubr.f32.mxu0 %v1236
        %1392 = vmatmul.mubr.f32.gmra.mrb[0].mxu0 %v1235
        %v1393 = vpop.f32.mrb[0].mxu0
        %v1394 = vadd.f32 %v1290, %v1393
        %v1395 = vpop.f32.mrb[0].mxu0
        %1396 = vmatprep.mubr.f32.mxu0 %v1238
        %1397 = vmatmul.mubr.f32.gmra.mrb[0].mxu0 %v1237
        %v1398 = vpop.f32.mrb[0].mxu0
        %v1399 = vadd.f32 %v1290, %v1398
        %v1400 = vpop.f32.mrb[0].mxu0
        %1401 = vmatprep.mubr.f32.mxu0 %v1240
        %1402 = vmatmul.mubr.f32.gmra.mrb[0].mxu0 %v1239
        %v1403 = vpop.f32.mrb[0].mxu0
        %v1404 = vadd.f32 %v1290, %v1403
        %v1405 = vpop.f32.mrb[0].mxu0
        %1406 = vmatprep.mubr.f32.mxu0 %v1242
        %1407 = vmatmul.mubr.f32.gmra.mrb[0].mxu0 %v1241
        %v1408 = vpop.f32.mrb[0].mxu0
        %v1409 = vadd.f32 %v1290, %v1408
        %v1410 = vpop.f32.mrb[0].mxu0
        %1411 = vmatprep.mubr.f32.mxu0 %v1244
        %1412 = vmatmul.mubr.f32.gmra.mrb[0].mxu0 %v1243
        %v1413 = vpop.f32.mrb[0].mxu0
        %v1414 = vadd.f32 %v1290, %v1413
        %v1415 = vpop.f32.mrb[0].mxu0
        %1416 = vmatprep.mubr.f32.mxu0 %v1246
        %1417 = vmatmul.mubr.f32.gmra.mrb[0].mxu0 %v1245
        %v1418 = vpop.f32.mrb[0].mxu0
        %v1419 = vadd.f32 %v1290, %v1418
        %v1420 = vpop.f32.mrb[0].mxu0
        %1421 = vmatprep.mubr.f32.mxu0 %v1248
        %1422 = vmatmul.mubr.f32.gmra.mrb[0].mxu0 %v1247
        %v1423 = vpop.f32.mrb[0].mxu0
        %v1424 = vadd.f32 %v1290, %v1423
        %v1425 = vpop.f32.mrb[0].mxu0
        %1426 = vmatprep.mubr.f32.mxu0 %v1250
        %1427 = vmatmul.mubr.f32.gmra.mrb[0].mxu0 %v1249
        %v1428 = vpop.f32.mrb[0].mxu0
        %v1429 = vadd.f32 %v1290, %v1428
        %v1430 = vpop.f32.mrb[0].mxu0
        %1431 = vmatprep.mubr.f32.mxu0 %v1252
        %1432 = vmatmul.mubr.f32.gmra.mrb[0].mxu0 %v1251
        %v1433 = vpop.f32.mrb[0].mxu0
        %v1434 = vadd.f32 %v1290, %v1433
        %v1435 = vpop.f32.mrb[0].mxu0
        %1436 = vdwg.mxu0
        %v1437 = vtanh.pop %v1359
        %v1438 = vtanh.pop %v1364
        %v1439 = vtanh.pop %v1369
        %v1440 = vtanh.pop %v1374
        %v1441 = vtanh.pop %v1379
        %v1442 = vtanh.pop %v1384
        %v1443 = vtanh.pop %v1389
        %v1444 = vtanh.pop %v1394
        %v1445 = vtanh.pop %v1399
        %v1446 = vtanh.pop %v1404
        %v1447 = vtanh.pop %v1409
        %v1448 = vtanh.pop %v1414
        %v1449 = vtanh.pop %v1419
        %v1450 = vtanh.pop %v1424
        %v1451 = vtanh.pop %v1429
        %v1452 = vtanh.pop %v1434
        %v1453 = vld [vmem:[#allocation10] sm:$0xff]
        %v1454 = vld [vmem:[#allocation10 + $0x8] sm:$0xff]
        %v1455 = vld [vmem:[#allocation10 + $0x10] sm:$0xff]
        %v1456 = vld [vmem:[#allocation10 + $0x18] sm:$0xff]
        %v1457 = vld [vmem:[#allocation10 + $0x20] sm:$0xff]
        %v1458 = vld [vmem:[#allocation10 + $0x28] sm:$0xff]
        %v1459 = vld [vmem:[#allocation10 + $0x30] sm:$0xff]
        %v1460 = vld [vmem:[#allocation10 + $0x38] sm:$0xff]
        %v1461 = vld [vmem:[#allocation10 + $0x40] sm:$0xff]
        %v1462 = vld [vmem:[#allocation10 + $0x48] sm:$0xff]
        %v1463 = vld [vmem:[#allocation10 + $0x50] sm:$0xff]
        %v1464 = vld [vmem:[#allocation10 + $0x58] sm:$0xff]
        %v1465 = vld [vmem:[#allocation10 + $0x60] sm:$0xff]
        %v1466 = vld [vmem:[#allocation10 + $0x68] sm:$0xff]
        %v1467 = vld [vmem:[#allocation10 + $0x70] sm:$0xff]
        %v1468 = vld [vmem:[#allocation10 + $0x78] sm:$0xff]
        %v1469 = vld [vmem:[%s8] sm:$0x1]
        %v1471 = vlaneseq
        %v1472 = vshrl.u32 %v1471, 7
        %v1473 = vsub.s32 0, %v1472
        %v1474 = vrot.slane %v1469, %v1473
        %1476 = vmatprep.subr.mxu0 0.0
        %1477 = vmatpush1.msra.mxu0 %v1453
        %1478 = vmatprep.subr.mxu0 0.0
        %1479 = vmatpush1.msra.mxu0 %v1454
        %1480 = vmatprep.subr.mxu0 0.0
        %1481 = vmatpush1.msra.mxu0 %v1455
        %1482 = vmatprep.subr.mxu0 0.0
        %1483 = vmatpush1.msra.mxu0 %v1456
        %1484 = vmatprep.subr.mxu0 0.0
        %1485 = vmatpush1.msra.mxu0 %v1457
        %1486 = vmatprep.subr.mxu0 0.0
        %1487 = vmatpush1.msra.mxu0 %v1458
        %1488 = vmatprep.subr.mxu0 0.0
        %1489 = vmatpush1.msra.mxu0 %v1459
        %1490 = vmatprep.subr.mxu0 0.0
        %1491 = vmatpush1.msra.mxu0 %v1460
        %1492 = vmatprep.subr.mxu0 0.0
        %1493 = vmatpush1.msra.mxu0 %v1461
        %1494 = vmatprep.subr.mxu0 0.0
        %1495 = vmatpush1.msra.mxu0 %v1462
        %1496 = vmatprep.subr.mxu0 0.0
        %1497 = vmatpush1.msra.mxu0 %v1463
        %1498 = vmatprep.subr.mxu0 0.0
        %1499 = vmatpush1.msra.mxu0 %v1464
        %1500 = vmatprep.subr.mxu0 0.0
        %1501 = vmatpush1.msra.mxu0 %v1465
        %1502 = vmatprep.subr.mxu0 0.0
        %1503 = vmatpush1.msra.mxu0 %v1466
        %1504 = vmatprep.subr.mxu0 0.0
        %1505 = vmatpush1.msra.mxu0 %v1467
        %1506 = vmatprep.subr.mxu0 0.0
        %1507 = vmatpush1.msra.mxu0 %v1468
        %1508 = vmatprep.subr.mxu0 0.0
        %1509 = vmatpush1.msra.mxu0 0.0
        %1510 = vmatprep.subr.mxu0 0.0
        %1511 = vmatpush1.msra.mxu0 0.0
        %1512 = vmatprep.subr.mxu0 0.0
        %1513 = vmatpush1.msra.mxu0 0.0
        %1514 = vmatprep.subr.mxu0 0.0
        %1515 = vmatpush1.msra.mxu0 0.0
        %1516 = vmatprep.subr.mxu0 0.0
        %1517 = vmatpush1.msra.mxu0 0.0
        %1518 = vmatprep.subr.mxu0 0.0
        %1519 = vmatpush1.msra.mxu0 0.0
        %1520 = vmatprep.subr.mxu0 0.0
        %1521 = vmatpush1.msra.mxu0 0.0
        %1522 = vmatprep.subr.mxu0 0.0
        %1523 = vmatpush1.msra.mxu0 0.0
        %1524 = vmatprep.subr.mxu0 0.0
        %1525 = vmatpush1.msra.mxu0 0.0
        %1526 = vmatprep.subr.mxu0 0.0
        %1527 = vmatpush1.msra.mxu0 0.0
        %1528 = vmatprep.subr.mxu0 0.0
        %1529 = vmatpush1.msra.mxu0 0.0
        %1530 = vmatprep.subr.mxu0 0.0
        %1531 = vmatpush1.msra.mxu0 0.0
        %1532 = vmatprep.subr.mxu0 0.0
        %1533 = vmatpush1.msra.mxu0 0.0
        %1534 = vmatprep.subr.mxu0 0.0
        %1535 = vmatpush1.msra.mxu0 0.0
        %1536 = vmatprep.subr.mxu0 0.0
        %1537 = vmatpush1.msra.mxu0 0.0
        %1538 = vmatprep.subr.mxu0 0.0
        %1539 = vmatpush1.msra.mxu0 0.0
        %1540 = vmatprep.mubr.f32.mxu0 0.0
        %1541 = vmatmul.mubr.f32.gmra.mrb[0].mxu0 %v1437
        %v1542 = vpop.f32.mrb[0].mxu0
        %v1543 = vadd.f32 %v1474, %v1542
        %v1544 = vpop.f32.mrb[0].mxu0
        %1545 = vmatprep.mubr.f32.mxu0 0.0
        %1546 = vmatmul.mubr.f32.gmra.mrb[0].mxu0 %v1438
        %v1547 = vpop.f32.mrb[0].mxu0
        %v1548 = vadd.f32 %v1474, %v1547
        %v1549 = vpop.f32.mrb[0].mxu0
        %1550 = vmatprep.mubr.f32.mxu0 0.0
        %1551 = vmatmul.mubr.f32.gmra.mrb[0].mxu0 %v1439
        %v1552 = vpop.f32.mrb[0].mxu0
        %v1553 = vadd.f32 %v1474, %v1552
        %v1554 = vpop.f32.mrb[0].mxu0
        %1555 = vmatprep.mubr.f32.mxu0 0.0
        %1556 = vmatmul.mubr.f32.gmra.mrb[0].mxu0 %v1440
        %v1557 = vpop.f32.mrb[0].mxu0
        %v1558 = vadd.f32 %v1474, %v1557
        %v1559 = vpop.f32.mrb[0].mxu0
        %1560 = vmatprep.mubr.f32.mxu0 0.0
        %1561 = vmatmul.mubr.f32.gmra.mrb[0].mxu0 %v1441
        %v1562 = vpop.f32.mrb[0].mxu0
        %v1563 = vadd.f32 %v1474, %v1562
        %v1564 = vpop.f32.mrb[0].mxu0
        %1565 = vmatprep.mubr.f32.mxu0 0.0
        %1566 = vmatmul.mubr.f32.gmra.mrb[0].mxu0 %v1442
        %v1567 = vpop.f32.mrb[0].mxu0
        %v1568 = vadd.f32 %v1474, %v1567
        %v1569 = vpop.f32.mrb[0].mxu0
        %1570 = vmatprep.mubr.f32.mxu0 0.0
        %1571 = vmatmul.mubr.f32.gmra.mrb[0].mxu0 %v1443
        %v1572 = vpop.f32.mrb[0].mxu0
        %v1573 = vadd.f32 %v1474, %v1572
        %v1574 = vpop.f32.mrb[0].mxu0
        %1575 = vmatprep.mubr.f32.mxu0 0.0
        %1576 = vmatmul.mubr.f32.gmra.mrb[0].mxu0 %v1444
        %v1577 = vpop.f32.mrb[0].mxu0
        %v1578 = vadd.f32 %v1474, %v1577
        %v1579 = vpop.f32.mrb[0].mxu0
        %1580 = vmatprep.mubr.f32.mxu0 0.0
        %1581 = vmatmul.mubr.f32.gmra.mrb[0].mxu0 %v1445
        %v1582 = vpop.f32.mrb[0].mxu0
        %v1583 = vadd.f32 %v1474, %v1582
        %v1584 = vpop.f32.mrb[0].mxu0
        %1585 = vmatprep.mubr.f32.mxu0 0.0
        %1586 = vmatmul.mubr.f32.gmra.mrb[0].mxu0 %v1446
        %v1587 = vpop.f32.mrb[0].mxu0
        %v1588 = vadd.f32 %v1474, %v1587
        %v1589 = vpop.f32.mrb[0].mxu0
        %1590 = vmatprep.mubr.f32.mxu0 0.0
        %1591 = vmatmul.mubr.f32.gmra.mrb[0].mxu0 %v1447
        %v1592 = vpop.f32.mrb[0].mxu0
        %v1593 = vadd.f32 %v1474, %v1592
        %v1594 = vpop.f32.mrb[0].mxu0
        %1595 = vmatprep.mubr.f32.mxu0 0.0
        %1596 = vmatmul.mubr.f32.gmra.mrb[0].mxu0 %v1448
        %v1597 = vpop.f32.mrb[0].mxu0
        %v1598 = vadd.f32 %v1474, %v1597
        %v1599 = vpop.f32.mrb[0].mxu0
        %1600 = vmatprep.mubr.f32.mxu0 0.0
        %1601 = vmatmul.mubr.f32.gmra.mrb[0].mxu0 %v1449
        %v1602 = vpop.f32.mrb[0].mxu0
        %v1603 = vadd.f32 %v1474, %v1602
        %v1604 = vpop.f32.mrb[0].mxu0
        %1605 = vmatprep.mubr.f32.mxu0 0.0
        %1606 = vmatmul.mubr.f32.gmra.mrb[0].mxu0 %v1450
        %v1607 = vpop.f32.mrb[0].mxu0
        %v1608 = vadd.f32 %v1474, %v1607
        %v1609 = vpop.f32.mrb[0].mxu0
        %1610 = vmatprep.mubr.f32.mxu0 0.0
        %1611 = vmatmul.mubr.f32.gmra.mrb[0].mxu0 %v1451
        %v1612 = vpop.f32.mrb[0].mxu0
        %v1613 = vadd.f32 %v1474, %v1612
        %v1614 = vpop.f32.mrb[0].mxu0
        %1615 = vmatprep.mubr.f32.mxu0 0.0
        %1616 = vmatmul.mubr.f32.gmra.mrb[0].mxu0 %v1452
        %v1617 = vpop.f32.mrb[0].mxu0
        %v1618 = vadd.f32 %v1474, %v1617
        %v1619 = vpop.f32.mrb[0].mxu0
        %1620 = vdwg.mxu0
        %v1621 = vxor.u32 %v1543, 2147483648
        %v1622 = vxor.u32 %v1548, 2147483648
        %v1623 = vxor.u32 %v1553, 2147483648
        %v1624 = vxor.u32 %v1558, 2147483648
        %v1625 = vxor.u32 %v1563, 2147483648
        %v1626 = vxor.u32 %v1568, 2147483648
        %v1627 = vxor.u32 %v1573, 2147483648
        %v1628 = vxor.u32 %v1578, 2147483648
        %v1629 = vxor.u32 %v1583, 2147483648
        %v1630 = vxor.u32 %v1588, 2147483648
        %v1631 = vxor.u32 %v1593, 2147483648
        %v1632 = vxor.u32 %v1598, 2147483648
        %v1633 = vxor.u32 %v1603, 2147483648
        %v1634 = vxor.u32 %v1608, 2147483648
        %v1635 = vxor.u32 %v1613, 2147483648
        %v1636 = vxor.u32 %v1618, 2147483648
        %v1637 = vmul.f32 %v1621, 1.442695
        %v1638 = vpow.pop %v1637
        %v1639 = vmul.f32 %v1622, 1.442695
        %v1640 = vpow.pop %v1639
        %v1641 = vmul.f32 %v1623, 1.442695
        %v1642 = vpow.pop %v1641
        %v1643 = vmul.f32 %v1624, 1.442695
        %v1644 = vpow.pop %v1643
        %v1645 = vmul.f32 %v1625, 1.442695
        %v1646 = vpow.pop %v1645
        %v1647 = vmul.f32 %v1626, 1.442695
        %v1648 = vpow.pop %v1647
        %v1649 = vmul.f32 %v1627, 1.442695
        %v1650 = vpow.pop %v1649
        %v1651 = vmul.f32 %v1628, 1.442695
        %v1652 = vpow.pop %v1651
        %v1653 = vmul.f32 %v1629, 1.442695
        %v1654 = vpow.pop %v1653
        %v1655 = vmul.f32 %v1630, 1.442695
        %v1656 = vpow.pop %v1655
        %v1657 = vmul.f32 %v1631, 1.442695
        %v1658 = vpow.pop %v1657
        %v1659 = vmul.f32 %v1632, 1.442695
        %v1660 = vpow.pop %v1659
        %v1661 = vmul.f32 %v1633, 1.442695
        %v1662 = vpow.pop %v1661
        %v1663 = vmul.f32 %v1634, 1.442695
        %v1664 = vpow.pop %v1663
        %v1665 = vmul.f32 %v1635, 1.442695
        %v1666 = vpow.pop %v1665
        %v1667 = vmul.f32 %v1636, 1.442695
        %v1668 = vpow.pop %v1667
        %v1669 = vadd.f32 %v1638, 1.0
        %v1670 = vadd.f32 %v1640, 1.0
        %v1671 = vadd.f32 %v1642, 1.0
        %v1672 = vadd.f32 %v1644, 1.0
        %v1673 = vadd.f32 %v1646, 1.0
        %v1674 = vadd.f32 %v1648, 1.0
        %v1675 = vadd.f32 %v1650, 1.0
        %v1676 = vadd.f32 %v1652, 1.0
        %v1677 = vadd.f32 %v1654, 1.0
        %v1678 = vadd.f32 %v1656, 1.0
        %v1679 = vadd.f32 %v1658, 1.0
        %v1680 = vadd.f32 %v1660, 1.0
        %v1681 = vadd.f32 %v1662, 1.0
        %v1682 = vadd.f32 %v1664, 1.0
        %v1683 = vadd.f32 %v1666, 1.0
        %v1684 = vadd.f32 %v1668, 1.0
        %v1685 = vrcp.pop %v1669
        %v1686 = vmul.f32 1.0, %v1685
        %v1687 = vrcp.pop %v1670
        %v1688 = vmul.f32 1.0, %v1687
        %v1689 = vrcp.pop %v1671
        %v1690 = vmul.f32 1.0, %v1689
        %v1691 = vrcp.pop %v1672
        %v1692 = vmul.f32 1.0, %v1691
        %v1693 = vrcp.pop %v1673
        %v1694 = vmul.f32 1.0, %v1693
        %v1695 = vrcp.pop %v1674
        %v1696 = vmul.f32 1.0, %v1695
        %v1697 = vrcp.pop %v1675
        %v1698 = vmul.f32 1.0, %v1697
        %v1699 = vrcp.pop %v1676
        %v1700 = vmul.f32 1.0, %v1699
        %v1701 = vrcp.pop %v1677
        %v1702 = vmul.f32 1.0, %v1701
        %v1703 = vrcp.pop %v1678
        %v1704 = vmul.f32 1.0, %v1703
        %v1705 = vrcp.pop %v1679
        %v1706 = vmul.f32 1.0, %v1705
        %v1707 = vrcp.pop %v1680
        %v1708 = vmul.f32 1.0, %v1707
        %v1709 = vrcp.pop %v1681
        %v1710 = vmul.f32 1.0, %v1709
        %v1711 = vrcp.pop %v1682
        %v1712 = vmul.f32 1.0, %v1711
        %v1713 = vrcp.pop %v1683
        %v1714 = vmul.f32 1.0, %v1713
        %v1715 = vrcp.pop %v1684
        %v1716 = vmul.f32 1.0, %v1715
        %1717 = vst [vmem:[%s408] sm:$0xff] %v1686
        %1718 = vst [vmem:[%s408 + $0x8] sm:$0xff] %v1688
        %1719 = vst [vmem:[%s408 + $0x10] sm:$0xff] %v1690
        %1720 = vst [vmem:[%s408 + $0x18] sm:$0xff] %v1692
        %1721 = vst [vmem:[%s408 + $0x20] sm:$0xff] %v1694
        %1722 = vst [vmem:[%s408 + $0x28] sm:$0xff] %v1696
        %1723 = vst [vmem:[%s408 + $0x30] sm:$0xff] %v1698
        %1724 = vst [vmem:[%s408 + $0x38] sm:$0xff] %v1700
        %1725 = vst [vmem:[%s408 + $0x40] sm:$0xff] %v1702
        %1726 = vst [vmem:[%s408 + $0x48] sm:$0xff] %v1704
        %1727 = vst [vmem:[%s408 + $0x50] sm:$0xff] %v1706
        %1728 = vst [vmem:[%s408 + $0x58] sm:$0xff] %v1708
        %1729 = vst [vmem:[%s408 + $0x60] sm:$0xff] %v1710
        %1730 = vst [vmem:[%s408 + $0x68] sm:$0xff] %v1712
        %1731 = vst [vmem:[%s408 + $0x70] sm:$0xff] %v1714
        %1732 = vst [vmem:[%s408 + $0x78] sm:$0xff] %v1716
        %s1733 = sand.u32 %s230, 1
        %s1734 = scalar_lea.sflag [#allocation4], %s1733
        %s1735 = sand.u32 %s230, 1
        %s1736 = smul.addr %s1735, 128
        %s1737 = scalar_lea.vmem [#allocation11], %s1736
        // Predicated region
        $region77: #{tpu_custom_call.1} parent=55 // pred_check
          %p1738 = pneg %p240
        $region78: #{tpu_custom_call.1} parent=55 // pred_check_branch
          %1740 = sbr.rel (%p1738) target = $region80
        $region79: #{tpu_custom_call.1} parent=55 // pred_region
          %s1741 = smul.u32 16, %s28
          %s1743 = ssub.s32 2048, 2048
          %1744 = vsyncadd %s1734, %s1743
          %s1745 = smul.addr %s1741, 128
          %s1746 = scalar_lea.hbm %s9, %s1745
          %s1747 = sshll.u32 %s1737, 4
          %s1748 = int_to_ptr.vmem [resolvable:$true] %s1747
          %1753 = dma.vmem_to_hbm [thread:$0]  %s1748, 2048, %s1746, %s1734, 128, 128, 8
        $region80: #{tpu_custom_call.1} parent=55 // pred_fallthru
          _
      $region56: #{tpu_custom_call.1} parent=5 // pred_fallthru
        _
      %p1754 = scmp.le.s32.totalorder 2, %s23
      // Predicated region
      $region81: #{tpu_custom_call.1} parent=5 // pred_check
        %p1755 = pneg %p1754
      $region82: #{tpu_custom_call.1} parent=5 // pred_check_branch
        %1757 = sbr.rel (%p1755) target = $region84
      $region83: #{tpu_custom_call.1} parent=5 // pred_region
        %s1758 = ssub.s32 %s23, 2
        // Predicated region
        $region85: #{tpu_custom_call.1} parent=83 // pred_check
          %p1759 = pneg %p246
        $region86: #{tpu_custom_call.1} parent=83 // pred_check_branch
          %1761 = sbr.rel (%p1759) target = $region88
        $region87: #{tpu_custom_call.1} parent=83 // pred_region
          %s1762 = sand.u32 %s231, 1
          %s1763 = scalar_lea.sflag [#allocation4], %s1762
          %s1764 = sand.u32 %s231, 1
          %s1765 = smul.addr %s1764, 128
          %s1766 = scalar_lea.vmem [#allocation11], %s1765
          %1767 = dma.done %s1763, 2048
        $region88: #{tpu_custom_call.1} parent=83 // pred_fallthru
          _
      $region84: #{tpu_custom_call.1} parent=5 // pred_fallthru
        _
    $region6: #{tpu_custom_call.1} parent=1 // loop_footer
      %s27 = sadd.s32 1, %s23
    $region7: #{tpu_custom_call.1} parent=1 // loop_footer_branch
      %22 = sbr.rel target = $region3
    $region8: #{tpu_custom_call.1} parent=1 // loop_exit
      _
    %1768 = vsyncpa [#allocation3], 1
    %s1769 = scalar_lea.sflag [#allocation3], 1
    %1770 = vsyncpa %s1769, 1
    %1771 = vsyncpa [#allocation6], 1
    %1772 = vsyncpa [#allocation9], 1
    %1773 = vsyncpa [#allocation4], 1
    %s1774 = scalar_lea.sflag [#allocation4], 1
    %1775 = vsyncpa %s1774, 1

</llo_original>
